<compile_context>
chip_gen: v5e
topology: v5e:2x2
jax: 0.10.0
libtpu: 0.0.40
codegen_flags: <defaults>
</compile_context>

<pallas_src>
import jax
import jax.numpy as jnp
from jax.experimental import pallas as pl
from jax.experimental.pallas import tpu as pltpu

NEG_SLOPE = 0.01   # nn.LeakyReLU default negative_slope
BN_EPS = 1e-5      # nn.BatchNorm2d default eps


# ----------------------------------------------------------------------------
# Fused UpBlock kernel (one batch element per grid step)
# ----------------------------------------------------------------------------
def _make_upblock_kernel(H, W, Cin, Cout):
    def kernel(x_ref, wb1_ref, wb2_ref, wb3_ref, wb4_ref, pvec_ref, o_ref,
               pad1, pad2, pad3):
        # x_ref   : (1, H, W*Cin)            lane-dense NHWC input slab
        # wbK_ref : (kh_K, W*C_K, W*Cout)    banded weights, one per row tap
        # pvec_ref: (12, W*Cout)             [bias, bn_scale, bn_shift] x 4 layers
        # o_ref   : (1, H, W*Cout)           lane-dense NHWC output slab
        # padK    : VMEM scratch, H-padded lane-dense input of conv K

        def epilogue(acc, base):
            b = pvec_ref[base + 0:base + 1, :]
            s = pvec_ref[base + 1:base + 2, :]
            t = pvec_ref[base + 2:base + 3, :]
            y = acc + b                                   # conv bias
            y = jnp.where(y >= 0, y, NEG_SLOPE * y)       # LeakyReLU
            return y * s + t                              # BatchNorm (eval, folded)

        def conv(pad_ref, wb_ref, kh, dil, base):
            acc = jnp.dot(pad_ref[0:H, :], wb_ref[0],
                          preferred_element_type=jnp.float32)
            for i in range(1, kh):                        # static unroll (kh <= 3)
                acc = acc + jnp.dot(pad_ref[i * dil:i * dil + H, :], wb_ref[i],
                                    preferred_element_type=jnp.float32)
            return epilogue(acc, base)                    # (H, W*Cout)

        # ---- conv1: 3x3, dilation 1, padding 1 --------------------------------
        pad1[...] = jnp.zeros_like(pad1)
        pad1[1:1 + H, :] = x_ref[0]
        y1 = conv(pad1, wb1_ref, kh=3, dil=1, base=0)

        # ---- conv2: 3x3, dilation 2, padding 2 --------------------------------
        pad2[...] = jnp.zeros_like(pad2)
        pad2[2:2 + H, :] = y1
        y2 = conv(pad2, wb2_ref, kh=3, dil=2, base=3)

        # ---- conv3: 2x2, dilation 2, padding 1 --------------------------------
        pad3[...] = jnp.zeros_like(pad3)
        pad3[1:1 + H, :] = y2
        y3 = conv(pad3, wb3_ref, kh=2, dil=2, base=6)

        # ---- concat(upE1,upE2,upE3) + conv4 1x1 == sum of three matmuls -------
        acc = jnp.dot(y1, wb4_ref[0], preferred_element_type=jnp.float32)
        acc = acc + jnp.dot(y2, wb4_ref[1], preferred_element_type=jnp.float32)
        acc = acc + jnp.dot(y3, wb4_ref[2], preferred_element_type=jnp.float32)
        o_ref[0] = epilogue(acc, 9)                       # lane-dense store

    return kernel


# ----------------------------------------------------------------------------
# Banded (lane-dense) weight construction: fold kw taps + W zero-padding
# ----------------------------------------------------------------------------
def _banded_weights(w_hwio, W, dil, pad):
    """w_hwio: (kh, kw, Cin, Cout) -> (kh, W*Cin, W*Cout) with
    WB[i][u*Cin+c, w*Cout+o] = w[i,j,c,o] iff u == w + j*dil - pad (else 0)."""
    kh, kw, Cin, Cout = w_hwio.shape
    j = jnp.arange(kw)[:, None, None]
    u = jnp.arange(W)[None, :, None]
    wo = jnp.arange(W)[None, None, :]
    ind = (u == wo + j * dil - pad).astype(w_hwio.dtype)          # (kw, W, W)
    mats = []
    for i in range(kh):
        wb = jnp.einsum('jco,juw->ucwo', w_hwio[i], ind)          # (W,Cin,W,Cout)
        mats.append(wb.reshape(W * Cin, W * Cout))
    return jnp.stack(mats, axis=0)


# ----------------------------------------------------------------------------
# Glue (plain JAX)
# ----------------------------------------------------------------------------
def pixel_shuffle_nchw(x, r=2):
    """Exact torch.nn.PixelShuffle semantics on NCHW."""
    N, C, Hh, Ww = x.shape
    Co = C // (r * r)
    x = x.reshape(N, Co, r, r, Hh, Ww)
    x = x.transpose(0, 1, 4, 2, 5, 3)
    return x.reshape(N, Co, Hh * r, Ww * r)


def upblock_forward(params, x_nchw, skip_nchw):
    """Fused-Pallas forward of UpBlock (eval mode, with_attention=False)."""
    upA = pixel_shuffle_nchw(x_nchw, 2)
    upB = jnp.concatenate([upA, skip_nchw], axis=1) if skip_nchw is not None else upA
    h = jnp.transpose(upB, (0, 2, 3, 1)).astype(jnp.float32)      # NHWC
    N, H, W, Cin = h.shape
    Cout = params["conv1"]["w"].shape[-1]

    x_flat = h.reshape(N, H, W * Cin)                             # lane-dense input

    wb1 = _banded_weights(params["conv1"]["w"], W, dil=1, pad=1)  # (3, W*Cin,  W*Cout)
    wb2 = _banded_weights(params["conv2"]["w"], W, dil=2, pad=2)  # (3, W*Cout, W*Cout)
    wb3 = _banded_weights(params["conv3"]["w"], W, dil=2, pad=1)  # (2, W*Cout, W*Cout)
    w4 = params["conv4"]["w"]                                     # (1,1,3*Cout,Cout)
    wb4 = jnp.stack(
        [_banded_weights(w4[:, :, s * Cout:(s + 1) * Cout, :], W, dil=1, pad=0)[0]
         for s in range(3)], axis=0)                              # (3, W*Cout, W*Cout)

    rows = []
    for name in ("conv1", "conv2", "conv3", "conv4"):
        p = params[name]
        rows += [jnp.tile(p["b"], W), jnp.tile(p["scale"], W), jnp.tile(p["shift"], W)]
    pvec = jnp.stack(rows, axis=0).astype(jnp.float32)            # (12, W*Cout)

    kernel = _make_upblock_kernel(H, W, Cin, Cout)
    out_flat = pl.pallas_call(
        kernel,
        out_shape=jax.ShapeDtypeStruct((N, H, W * Cout), jnp.float32),
        grid=(N,),
        in_specs=[
            pl.BlockSpec((1, H, W * Cin), lambda n: (n, 0, 0)),
            pl.BlockSpec(wb1.shape, lambda n: (0, 0, 0)),
            pl.BlockSpec(wb2.shape, lambda n: (0, 0, 0)),
            pl.BlockSpec(wb3.shape, lambda n: (0, 0, 0)),
            pl.BlockSpec(wb4.shape, lambda n: (0, 0, 0)),
            pl.BlockSpec(pvec.shape, lambda n: (0, 0)),
        ],
        out_specs=pl.BlockSpec((1, H, W * Cout), lambda n: (n, 0, 0)),
        scratch_shapes=[
            pltpu.VMEM((H + 2, W * Cin), jnp.float32),    # conv1 H-padded input
            pltpu.VMEM((H + 4, W * Cout), jnp.float32),   # conv2 H-padded input
            pltpu.VMEM((H + 2, W * Cout), jnp.float32),   # conv3 H-padded input
        ],
        compiler_params=pltpu.CompilerParams(
            dimension_semantics=("parallel",),
            vmem_limit_bytes=32 * 1024 * 1024,
        ),
    )(x_flat, wb1, wb2, wb3, wb4, pvec)

    out = out_flat.reshape(N, H, W, Cout)
    return jnp.transpose(out, (0, 3, 1, 2))                       # NHWC -> NCHW


def init_params(key, in_filters, out_filters, skip_filters):
    c1_in = in_filters // 4 + skip_filters
    specs = {
        "conv1": (3, 3, c1_in, out_filters),
        "conv2": (3, 3, out_filters, out_filters),
        "conv3": (2, 2, out_filters, out_filters),
        "conv4": (1, 1, out_filters * 3, out_filters),
    }
    params = {}
    keys = jax.random.split(key, len(specs))
    for k, (name, (kh, kw, cin, cout)) in zip(keys, specs.items()):
        kw_, kb, kg, kbeta, km, kv = jax.random.split(k, 6)
        fan_in = cin * kh * kw
        w = jax.random.normal(kw_, (kh, kw, cin, cout), jnp.float32) / jnp.sqrt(fan_in)
        b = 0.1 * jax.random.normal(kb, (cout,), jnp.float32)
        gamma = 1.0 + 0.1 * jax.random.normal(kg, (cout,), jnp.float32)
        beta = 0.1 * jax.random.normal(kbeta, (cout,), jnp.float32)
        rmean = 0.1 * jax.random.normal(km, (cout,), jnp.float32)
        rvar = 1.0 + 0.1 * jax.random.uniform(kv, (cout,), jnp.float32)
        scale = gamma / jnp.sqrt(rvar + BN_EPS)
        shift = beta - rmean * scale
        params[name] = dict(w=w, b=b, scale=scale, shift=shift)
    return params


def upblock_reference(params, x_nchw, skip_nchw):
    """Pure-JAX reference (lax.conv) for correctness checking."""
    def conv_fn(hh, p, dil, pad):
        y = jax.lax.conv_general_dilated(
            hh, p["w"], window_strides=(1, 1),
            padding=[(pad, pad), (pad, pad)],
            rhs_dilation=(dil, dil),
            dimension_numbers=("NHWC", "HWIO", "NHWC"),
            precision=jax.lax.Precision.HIGHEST)
        y = y + p["b"]
        y = jnp.where(y >= 0, y, NEG_SLOPE * y)
        return y * p["scale"] + p["shift"]

    upA = pixel_shuffle_nchw(x_nchw, 2)
    upB = jnp.concatenate([upA, skip_nchw], axis=1) if skip_nchw is not None else upA
    hh = jnp.transpose(upB, (0, 2, 3, 1)).astype(jnp.float32)
    upE1 = conv_fn(hh, params["conv1"], dil=1, pad=1)
    upE2 = conv_fn(upE1, params["conv2"], dil=2, pad=2)
    upE3 = conv_fn(upE2, params["conv3"], dil=2, pad=1)
    concat = jnp.concatenate([upE1, upE2, upE3], axis=-1)
    out = conv_fn(concat, params["conv4"], dil=1, pad=0)
    return jnp.transpose(out, (0, 3, 1, 2))


if __name__ == "__main__":
    key = jax.random.PRNGKey(0)
    in_filters, out_filters, skip_filters = 16, 16, 8
    N, H, W = 2, 8, 8                     # x spatial dims before PixelShuffle(2)

    k_x, k_s, k_p = jax.random.split(key, 3)
    x = jax.random.normal(k_x, (N, in_filters, H, W), jnp.float32)            # NCHW
    skip = jax.random.normal(k_s, (N, skip_filters, 2 * H, 2 * W), jnp.float32)
    params = init_params(k_p, in_filters, out_filters, skip_filters)

    fwd = jax.jit(upblock_forward)
    out = jax.block_until_ready(fwd(params, x, skip))
    assert out.shape == (N, out_filters, 2 * H, 2 * W), out.shape

    ref = jax.block_until_ready(upblock_reference(params, x, skip))
    max_err = float(jnp.max(jnp.abs(out - ref)))
    if not jnp.allclose(out, ref, atol=2e-3, rtol=2e-3):
        raise SystemExit(f"MISMATCH vs reference: max abs err = {max_err}")

    print("KERNEL_OK")
</pallas_src>

<mosaic_0001>
module attributes {stable_mosaic.version = 11 : i64} {
  func.func @kernel(%arg0: i32, %arg1: memref<1x16x192xf32, #tpu.memory_space<vmem>>, %arg2: memref<3x192x256xf32, #tpu.memory_space<vmem>>, %arg3: memref<3x256x256xf32, #tpu.memory_space<vmem>>, %arg4: memref<2x256x256xf32, #tpu.memory_space<vmem>>, %arg5: memref<3x256x256xf32, #tpu.memory_space<vmem>>, %arg6: memref<12x256xf32, #tpu.memory_space<vmem>>, %arg7: memref<1x16x256xf32, #tpu.memory_space<vmem>>, %arg8: memref<18x192xf32, #tpu.memory_space<vmem>>, %arg9: memref<20x256xf32, #tpu.memory_space<vmem>>, %arg10: memref<18x256xf32, #tpu.memory_space<vmem>>) attributes {dimension_semantics = [#tpu.dimension_semantics<parallel>], iteration_bounds = array<i64: 2>, scalar_prefetch = 0 : i64, scratch_operands = 3 : i64, tpu.core_type = #tpu.core_type<tc>, window_params = [{transform_indices = @transform_0, window_bounds = array<i64: 1, 16, 192>}, {pipeline_mode = #tpu.pipeline_mode<synchronous>, transform_indices = @transform_1, window_bounds = array<i64: 3, 192, 256>}, {pipeline_mode = #tpu.pipeline_mode<synchronous>, transform_indices = @transform_2, window_bounds = array<i64: 3, 256, 256>}, {pipeline_mode = #tpu.pipeline_mode<synchronous>, transform_indices = @transform_3, window_bounds = array<i64: 2, 256, 256>}, {pipeline_mode = #tpu.pipeline_mode<synchronous>, transform_indices = @transform_4, window_bounds = array<i64: 3, 256, 256>}, {pipeline_mode = #tpu.pipeline_mode<synchronous>, transform_indices = @transform_5, window_bounds = array<i64: 12, 256>}, {transform_indices = @transform_6, window_bounds = array<i64: 1, 16, 256>}]} {
    %cst = arith.constant 0.000000e+00 : f32
    %0 = vector.broadcast %cst : f32 to vector<18x192xf32>
    %c0 = arith.constant 0 : index
    %c0_0 = arith.constant 0 : index
    %1 = vector.load %arg8[%c0, %c0_0] : memref<18x192xf32, #tpu.memory_space<vmem>>, vector<18x192xf32>
    tpu.vector_store %arg8[%c0, %c0_0], %0 {strides = array<i32>} : memref<18x192xf32, #tpu.memory_space<vmem>>, vector<18x192xf32>,
    %c0_1 = arith.constant 0 : index
    %c0_2 = arith.constant 0 : index
    %c0_3 = arith.constant 0 : index
    %2 = vector.load %arg1[%c0_1, %c0_2, %c0_3] : memref<1x16x192xf32, #tpu.memory_space<vmem>>, vector<1x16x192xf32>
    %3 = vector.shape_cast %2 : vector<1x16x192xf32> to vector<16x192xf32>
    %c1 = arith.constant 1 : index
    %c0_4 = arith.constant 0 : index
    %4 = vector.load %arg8[%c1, %c0_4] : memref<18x192xf32, #tpu.memory_space<vmem>>, vector<16x192xf32>
    tpu.vector_store %arg8[%c1, %c0_4], %3 {strides = array<i32>} : memref<18x192xf32, #tpu.memory_space<vmem>>, vector<16x192xf32>,
    %c0_5 = arith.constant 0 : index
    %c0_6 = arith.constant 0 : index
    %5 = vector.load %arg8[%c0_5, %c0_6] : memref<18x192xf32, #tpu.memory_space<vmem>>, vector<16x192xf32>
    %c0_7 = arith.constant 0 : index
    %c0_8 = arith.constant 0 : index
    %c0_9 = arith.constant 0 : index
    %6 = vector.load %arg2[%c0_7, %c0_8, %c0_9] : memref<3x192x256xf32, #tpu.memory_space<vmem>>, vector<1x192x256xf32>
    %7 = vector.shape_cast %6 : vector<1x192x256xf32> to vector<192x256xf32>
    %cst_10 = arith.constant dense<0.000000e+00> : vector<16x256xf32>
    %8 = tpu.matmul %5, %7, %cst_10 {dimension_numbers = #tpu.dot_dimension_numbers<[1], [0], [0], [1], [0, 0, 1, 1], [], []>} : vector<16x192xf32>, vector<192x256xf32>, vector<16x256xf32> -> vector<16x256xf32>
    %c1_11 = arith.constant 1 : index
    %c0_12 = arith.constant 0 : index
    %9 = vector.load %arg8[%c1_11, %c0_12] : memref<18x192xf32, #tpu.memory_space<vmem>>, vector<16x192xf32>
    %c1_13 = arith.constant 1 : index
    %c0_14 = arith.constant 0 : index
    %c0_15 = arith.constant 0 : index
    %10 = vector.load %arg2[%c1_13, %c0_14, %c0_15] : memref<3x192x256xf32, #tpu.memory_space<vmem>>, vector<1x192x256xf32>
    %11 = vector.shape_cast %10 : vector<1x192x256xf32> to vector<192x256xf32>
    %cst_16 = arith.constant dense<0.000000e+00> : vector<16x256xf32>
    %12 = tpu.matmul %9, %11, %cst_16 {dimension_numbers = #tpu.dot_dimension_numbers<[1], [0], [0], [1], [0, 0, 1, 1], [], []>} : vector<16x192xf32>, vector<192x256xf32>, vector<16x256xf32> -> vector<16x256xf32>
    %13 = arith.addf %8, %12 : vector<16x256xf32>
    %c2 = arith.constant 2 : index
    %c0_17 = arith.constant 0 : index
    %14 = vector.load %arg8[%c2, %c0_17] : memref<18x192xf32, #tpu.memory_space<vmem>>, vector<16x192xf32>
    %c2_18 = arith.constant 2 : index
    %c0_19 = arith.constant 0 : index
    %c0_20 = arith.constant 0 : index
    %15 = vector.load %arg2[%c2_18, %c0_19, %c0_20] : memref<3x192x256xf32, #tpu.memory_space<vmem>>, vector<1x192x256xf32>
    %16 = vector.shape_cast %15 : vector<1x192x256xf32> to vector<192x256xf32>
    %cst_21 = arith.constant dense<0.000000e+00> : vector<16x256xf32>
    %17 = tpu.matmul %14, %16, %cst_21 {dimension_numbers = #tpu.dot_dimension_numbers<[1], [0], [0], [1], [0, 0, 1, 1], [], []>} : vector<16x192xf32>, vector<192x256xf32>, vector<16x256xf32> -> vector<16x256xf32>
    %18 = arith.addf %13, %17 : vector<16x256xf32>
    %c0_22 = arith.constant 0 : index
    %c0_23 = arith.constant 0 : index
    %19 = vector.load %arg6[%c0_22, %c0_23] : memref<12x256xf32, #tpu.memory_space<vmem>>, vector<1x256xf32>
    %c1_24 = arith.constant 1 : index
    %c0_25 = arith.constant 0 : index
    %20 = vector.load %arg6[%c1_24, %c0_25] : memref<12x256xf32, #tpu.memory_space<vmem>>, vector<1x256xf32>
    %c2_26 = arith.constant 2 : index
    %c0_27 = arith.constant 0 : index
    %21 = vector.load %arg6[%c2_26, %c0_27] : memref<12x256xf32, #tpu.memory_space<vmem>>, vector<1x256xf32>
    %22 = vector.broadcast %19 : vector<1x256xf32> to vector<16x256xf32>
    %23 = arith.addf %18, %22 : vector<16x256xf32>
    %cst_28 = arith.constant 0.000000e+00 : f32
    %24 = vector.broadcast %cst_28 : f32 to vector<16x256xf32>
    %25 = arith.cmpf oge, %23, %24 : vector<16x256xf32>
    %cst_29 = arith.constant 0.00999999977 : f32
    %26 = vector.broadcast %cst_29 : f32 to vector<16x256xf32>
    %27 = arith.mulf %26, %23 : vector<16x256xf32>
    %28 = arith.select %25, %23, %27 : vector<16x256xi1>, vector<16x256xf32>
    %29 = vector.broadcast %20 : vector<1x256xf32> to vector<16x256xf32>
    %30 = arith.mulf %28, %29 : vector<16x256xf32>
    %31 = vector.broadcast %21 : vector<1x256xf32> to vector<16x256xf32>
    %32 = arith.addf %30, %31 : vector<16x256xf32>
    %cst_30 = arith.constant 0.000000e+00 : f32
    %33 = vector.broadcast %cst_30 : f32 to vector<20x256xf32>
    %c0_31 = arith.constant 0 : index
    %c0_32 = arith.constant 0 : index
    %34 = vector.load %arg9[%c0_31, %c0_32] : memref<20x256xf32, #tpu.memory_space<vmem>>, vector<20x256xf32>
    tpu.vector_store %arg9[%c0_31, %c0_32], %33 {strides = array<i32>} : memref<20x256xf32, #tpu.memory_space<vmem>>, vector<20x256xf32>,
    %c2_33 = arith.constant 2 : index
    %c0_34 = arith.constant 0 : index
    %35 = vector.load %arg9[%c2_33, %c0_34] : memref<20x256xf32, #tpu.memory_space<vmem>>, vector<16x256xf32>
    tpu.vector_store %arg9[%c2_33, %c0_34], %32 {strides = array<i32>} : memref<20x256xf32, #tpu.memory_space<vmem>>, vector<16x256xf32>,
    %c0_35 = arith.constant 0 : index
    %c0_36 = arith.constant 0 : index
    %36 = vector.load %arg9[%c0_35, %c0_36] : memref<20x256xf32, #tpu.memory_space<vmem>>, vector<16x256xf32>
    %c0_37 = arith.constant 0 : index
    %c0_38 = arith.constant 0 : index
    %c0_39 = arith.constant 0 : index
    %37 = vector.load %arg3[%c0_37, %c0_38, %c0_39] : memref<3x256x256xf32, #tpu.memory_space<vmem>>, vector<1x256x256xf32>
    %38 = vector.shape_cast %37 : vector<1x256x256xf32> to vector<256x256xf32>
    %cst_40 = arith.constant dense<0.000000e+00> : vector<16x256xf32>
    %39 = tpu.matmul %36, %38, %cst_40 {dimension_numbers = #tpu.dot_dimension_numbers<[1], [0], [0], [1], [0, 0, 1, 1], [], []>} : vector<16x256xf32>, vector<256x256xf32>, vector<16x256xf32> -> vector<16x256xf32>
    %c2_41 = arith.constant 2 : index
    %c0_42 = arith.constant 0 : index
    %40 = vector.load %arg9[%c2_41, %c0_42] : memref<20x256xf32, #tpu.memory_space<vmem>>, vector<16x256xf32>
    %c1_43 = arith.constant 1 : index
    %c0_44 = arith.constant 0 : index
    %c0_45 = arith.constant 0 : index
    %41 = vector.load %arg3[%c1_43, %c0_44, %c0_45] : memref<3x256x256xf32, #tpu.memory_space<vmem>>, vector<1x256x256xf32>
    %42 = vector.shape_cast %41 : vector<1x256x256xf32> to vector<256x256xf32>
    %cst_46 = arith.constant dense<0.000000e+00> : vector<16x256xf32>
    %43 = tpu.matmul %40, %42, %cst_46 {dimension_numbers = #tpu.dot_dimension_numbers<[1], [0], [0], [1], [0, 0, 1, 1], [], []>} : vector<16x256xf32>, vector<256x256xf32>, vector<16x256xf32> -> vector<16x256xf32>
    %44 = arith.addf %39, %43 : vector<16x256xf32>
    %c4 = arith.constant 4 : index
    %c0_47 = arith.constant 0 : index
    %45 = vector.load %arg9[%c4, %c0_47] : memref<20x256xf32, #tpu.memory_space<vmem>>, vector<16x256xf32>
    %c2_48 = arith.constant 2 : index
    %c0_49 = arith.constant 0 : index
    %c0_50 = arith.constant 0 : index
    %46 = vector.load %arg3[%c2_48, %c0_49, %c0_50] : memref<3x256x256xf32, #tpu.memory_space<vmem>>, vector<1x256x256xf32>
    %47 = vector.shape_cast %46 : vector<1x256x256xf32> to vector<256x256xf32>
    %cst_51 = arith.constant dense<0.000000e+00> : vector<16x256xf32>
    %48 = tpu.matmul %45, %47, %cst_51 {dimension_numbers = #tpu.dot_dimension_numbers<[1], [0], [0], [1], [0, 0, 1, 1], [], []>} : vector<16x256xf32>, vector<256x256xf32>, vector<16x256xf32> -> vector<16x256xf32>
    %49 = arith.addf %44, %48 : vector<16x256xf32>
    %c3 = arith.constant 3 : index
    %c0_52 = arith.constant 0 : index
    %50 = vector.load %arg6[%c3, %c0_52] : memref<12x256xf32, #tpu.memory_space<vmem>>, vector<1x256xf32>
    %c4_53 = arith.constant 4 : index
    %c0_54 = arith.constant 0 : index
    %51 = vector.load %arg6[%c4_53, %c0_54] : memref<12x256xf32, #tpu.memory_space<vmem>>, vector<1x256xf32>
    %c5 = arith.constant 5 : index
    %c0_55 = arith.constant 0 : index
    %52 = vector.load %arg6[%c5, %c0_55] : memref<12x256xf32, #tpu.memory_space<vmem>>, vector<1x256xf32>
    %53 = vector.broadcast %50 : vector<1x256xf32> to vector<16x256xf32>
    %54 = arith.addf %49, %53 : vector<16x256xf32>
    %cst_56 = arith.constant 0.000000e+00 : f32
    %55 = vector.broadcast %cst_56 : f32 to vector<16x256xf32>
    %56 = arith.cmpf oge, %54, %55 : vector<16x256xf32>
    %cst_57 = arith.constant 0.00999999977 : f32
    %57 = vector.broadcast %cst_57 : f32 to vector<16x256xf32>
    %58 = arith.mulf %57, %54 : vector<16x256xf32>
    %59 = arith.select %56, %54, %58 : vector<16x256xi1>, vector<16x256xf32>
    %60 = vector.broadcast %51 : vector<1x256xf32> to vector<16x256xf32>
    %61 = arith.mulf %59, %60 : vector<16x256xf32>
    %62 = vector.broadcast %52 : vector<1x256xf32> to vector<16x256xf32>
    %63 = arith.addf %61, %62 : vector<16x256xf32>
    %cst_58 = arith.constant 0.000000e+00 : f32
    %64 = vector.broadcast %cst_58 : f32 to vector<18x256xf32>
    %c0_59 = arith.constant 0 : index
    %c0_60 = arith.constant 0 : index
    %65 = vector.load %arg10[%c0_59, %c0_60] : memref<18x256xf32, #tpu.memory_space<vmem>>, vector<18x256xf32>
    tpu.vector_store %arg10[%c0_59, %c0_60], %64 {strides = array<i32>} : memref<18x256xf32, #tpu.memory_space<vmem>>, vector<18x256xf32>,
    %c1_61 = arith.constant 1 : index
    %c0_62 = arith.constant 0 : index
    %66 = vector.load %arg10[%c1_61, %c0_62] : memref<18x256xf32, #tpu.memory_space<vmem>>, vector<16x256xf32>
    tpu.vector_store %arg10[%c1_61, %c0_62], %63 {strides = array<i32>} : memref<18x256xf32, #tpu.memory_space<vmem>>, vector<16x256xf32>,
    %c0_63 = arith.constant 0 : index
    %c0_64 = arith.constant 0 : index
    %67 = vector.load %arg10[%c0_63, %c0_64] : memref<18x256xf32, #tpu.memory_space<vmem>>, vector<16x256xf32>
    %c0_65 = arith.constant 0 : index
    %c0_66 = arith.constant 0 : index
    %c0_67 = arith.constant 0 : index
    %68 = vector.load %arg4[%c0_65, %c0_66, %c0_67] : memref<2x256x256xf32, #tpu.memory_space<vmem>>, vector<1x256x256xf32>
    %69 = vector.shape_cast %68 : vector<1x256x256xf32> to vector<256x256xf32>
    %cst_68 = arith.constant dense<0.000000e+00> : vector<16x256xf32>
    %70 = tpu.matmul %67, %69, %cst_68 {dimension_numbers = #tpu.dot_dimension_numbers<[1], [0], [0], [1], [0, 0, 1, 1], [], []>} : vector<16x256xf32>, vector<256x256xf32>, vector<16x256xf32> -> vector<16x256xf32>
    %c2_69 = arith.constant 2 : index
    %c0_70 = arith.constant 0 : index
    %71 = vector.load %arg10[%c2_69, %c0_70] : memref<18x256xf32, #tpu.memory_space<vmem>>, vector<16x256xf32>
    %c1_71 = arith.constant 1 : index
    %c0_72 = arith.constant 0 : index
    %c0_73 = arith.constant 0 : index
    %72 = vector.load %arg4[%c1_71, %c0_72, %c0_73] : memref<2x256x256xf32, #tpu.memory_space<vmem>>, vector<1x256x256xf32>
    %73 = vector.shape_cast %72 : vector<1x256x256xf32> to vector<256x256xf32>
    %cst_74 = arith.constant dense<0.000000e+00> : vector<16x256xf32>
    %74 = tpu.matmul %71, %73, %cst_74 {dimension_numbers = #tpu.dot_dimension_numbers<[1], [0], [0], [1], [0, 0, 1, 1], [], []>} : vector<16x256xf32>, vector<256x256xf32>, vector<16x256xf32> -> vector<16x256xf32>
    %75 = arith.addf %70, %74 : vector<16x256xf32>
    %c6 = arith.constant 6 : index
    %c0_75 = arith.constant 0 : index
    %76 = vector.load %arg6[%c6, %c0_75] : memref<12x256xf32, #tpu.memory_space<vmem>>, vector<1x256xf32>
    %c7 = arith.constant 7 : index
    %c0_76 = arith.constant 0 : index
    %77 = vector.load %arg6[%c7, %c0_76] : memref<12x256xf32, #tpu.memory_space<vmem>>, vector<1x256xf32>
    %c8 = arith.constant 8 : index
    %c0_77 = arith.constant 0 : index
    %78 = vector.load %arg6[%c8, %c0_77] : memref<12x256xf32, #tpu.memory_space<vmem>>, vector<1x256xf32>
    %79 = vector.broadcast %76 : vector<1x256xf32> to vector<16x256xf32>
    %80 = arith.addf %75, %79 : vector<16x256xf32>
    %cst_78 = arith.constant 0.000000e+00 : f32
    %81 = vector.broadcast %cst_78 : f32 to vector<16x256xf32>
    %82 = arith.cmpf oge, %80, %81 : vector<16x256xf32>
    %cst_79 = arith.constant 0.00999999977 : f32
    %83 = vector.broadcast %cst_79 : f32 to vector<16x256xf32>
    %84 = arith.mulf %83, %80 : vector<16x256xf32>
    %85 = arith.select %82, %80, %84 : vector<16x256xi1>, vector<16x256xf32>
    %86 = vector.broadcast %77 : vector<1x256xf32> to vector<16x256xf32>
    %87 = arith.mulf %85, %86 : vector<16x256xf32>
    %88 = vector.broadcast %78 : vector<1x256xf32> to vector<16x256xf32>
    %89 = arith.addf %87, %88 : vector<16x256xf32>
    %c0_80 = arith.constant 0 : index
    %c0_81 = arith.constant 0 : index
    %c0_82 = arith.constant 0 : index
    %90 = vector.load %arg5[%c0_80, %c0_81, %c0_82] : memref<3x256x256xf32, #tpu.memory_space<vmem>>, vector<1x256x256xf32>
    %91 = vector.shape_cast %90 : vector<1x256x256xf32> to vector<256x256xf32>
    %cst_83 = arith.constant dense<0.000000e+00> : vector<16x256xf32>
    %92 = tpu.matmul %32, %91, %cst_83 {dimension_numbers = #tpu.dot_dimension_numbers<[1], [0], [0], [1], [0, 0, 1, 1], [], []>} : vector<16x256xf32>, vector<256x256xf32>, vector<16x256xf32> -> vector<16x256xf32>
    %c1_84 = arith.constant 1 : index
    %c0_85 = arith.constant 0 : index
    %c0_86 = arith.constant 0 : index
    %93 = vector.load %arg5[%c1_84, %c0_85, %c0_86] : memref<3x256x256xf32, #tpu.memory_space<vmem>>, vector<1x256x256xf32>
    %94 = vector.shape_cast %93 : vector<1x256x256xf32> to vector<256x256xf32>
    %cst_87 = arith.constant dense<0.000000e+00> : vector<16x256xf32>
    %95 = tpu.matmul %63, %94, %cst_87 {dimension_numbers = #tpu.dot_dimension_numbers<[1], [0], [0], [1], [0, 0, 1, 1], [], []>} : vector<16x256xf32>, vector<256x256xf32>, vector<16x256xf32> -> vector<16x256xf32>
    %96 = arith.addf %92, %95 : vector<16x256xf32>
    %c2_88 = arith.constant 2 : index
    %c0_89 = arith.constant 0 : index
    %c0_90 = arith.constant 0 : index
    %97 = vector.load %arg5[%c2_88, %c0_89, %c0_90] : memref<3x256x256xf32, #tpu.memory_space<vmem>>, vector<1x256x256xf32>
    %98 = vector.shape_cast %97 : vector<1x256x256xf32> to vector<256x256xf32>
    %cst_91 = arith.constant dense<0.000000e+00> : vector<16x256xf32>
    %99 = tpu.matmul %89, %98, %cst_91 {dimension_numbers = #tpu.dot_dimension_numbers<[1], [0], [0], [1], [0, 0, 1, 1], [], []>} : vector<16x256xf32>, vector<256x256xf32>, vector<16x256xf32> -> vector<16x256xf32>
    %100 = arith.addf %96, %99 : vector<16x256xf32>
    %c9 = arith.constant 9 : index
    %c0_92 = arith.constant 0 : index
    %101 = vector.load %arg6[%c9, %c0_92] : memref<12x256xf32, #tpu.memory_space<vmem>>, vector<1x256xf32>
    %c10 = arith.constant 10 : index
    %c0_93 = arith.constant 0 : index
    %102 = vector.load %arg6[%c10, %c0_93] : memref<12x256xf32, #tpu.memory_space<vmem>>, vector<1x256xf32>
    %c11 = arith.constant 11 : index
    %c0_94 = arith.constant 0 : index
    %103 = vector.load %arg6[%c11, %c0_94] : memref<12x256xf32, #tpu.memory_space<vmem>>, vector<1x256xf32>
    %104 = vector.broadcast %101 : vector<1x256xf32> to vector<16x256xf32>
    %105 = arith.addf %100, %104 : vector<16x256xf32>
    %cst_95 = arith.constant 0.000000e+00 : f32
    %106 = vector.broadcast %cst_95 : f32 to vector<16x256xf32>
    %107 = arith.cmpf oge, %105, %106 : vector<16x256xf32>
    %cst_96 = arith.constant 0.00999999977 : f32
    %108 = vector.broadcast %cst_96 : f32 to vector<16x256xf32>
    %109 = arith.mulf %108, %105 : vector<16x256xf32>
    %110 = arith.select %107, %105, %109 : vector<16x256xi1>, vector<16x256xf32>
    %111 = vector.broadcast %102 : vector<1x256xf32> to vector<16x256xf32>
    %112 = arith.mulf %110, %111 : vector<16x256xf32>
    %113 = vector.broadcast %103 : vector<1x256xf32> to vector<16x256xf32>
    %114 = arith.addf %112, %113 : vector<16x256xf32>
    %c0_97 = arith.constant 0 : index
    %c0_98 = arith.constant 0 : index
    %c0_99 = arith.constant 0 : index
    %115 = vector.load %arg7[%c0_97, %c0_98, %c0_99] : memref<1x16x256xf32, #tpu.memory_space<vmem>>, vector<1x16x256xf32>
    %116 = vector.shape_cast %115 : vector<1x16x256xf32> to vector<16x256xf32>
    %117 = vector.shape_cast %114 : vector<16x256xf32> to vector<1x16x256xf32>
    tpu.vector_store %arg7[%c0_97, %c0_98, %c0_99], %117 {strides = array<i32>} : memref<1x16x256xf32, #tpu.memory_space<vmem>>, vector<1x16x256xf32>,
    return
  }
  func.func @transform_0(%arg0: i32) -> (i32, i32, i32) {
    %c0_i32 = arith.constant 0 : i32
    %c0_i32_0 = arith.constant 0 : i32
    %c0_i32_1 = arith.constant 0 : i32
    return %arg0, %c0_i32, %c0_i32_0 : i32, i32, i32
  }
  func.func @transform_1(%arg0: i32) -> (i32, i32, i32) {
    %c0_i32 = arith.constant 0 : i32
    %c0_i32_0 = arith.constant 0 : i32
    %c0_i32_1 = arith.constant 0 : i32
    %c0_i32_2 = arith.constant 0 : i32
    return %c0_i32, %c0_i32_0, %c0_i32_1 : i32, i32, i32
  }
  func.func @transform_2(%arg0: i32) -> (i32, i32, i32) {
    %c0_i32 = arith.constant 0 : i32
    %c0_i32_0 = arith.constant 0 : i32
    %c0_i32_1 = arith.constant 0 : i32
    %c0_i32_2 = arith.constant 0 : i32
    return %c0_i32, %c0_i32_0, %c0_i32_1 : i32, i32, i32
  }
  func.func @transform_3(%arg0: i32) -> (i32, i32, i32) {
    %c0_i32 = arith.constant 0 : i32
    %c0_i32_0 = arith.constant 0 : i32
    %c0_i32_1 = arith.constant 0 : i32
    %c0_i32_2 = arith.constant 0 : i32
    return %c0_i32, %c0_i32_0, %c0_i32_1 : i32, i32, i32
  }
  func.func @transform_4(%arg0: i32) -> (i32, i32, i32) {
    %c0_i32 = arith.constant 0 : i32
    %c0_i32_0 = arith.constant 0 : i32
    %c0_i32_1 = arith.constant 0 : i32
    %c0_i32_2 = arith.constant 0 : i32
    return %c0_i32, %c0_i32_0, %c0_i32_1 : i32, i32, i32
  }
  func.func @transform_5(%arg0: i32) -> (i32, i32) {
    %c0_i32 = arith.constant 0 : i32
    %c0_i32_0 = arith.constant 0 : i32
    %c0_i32_1 = arith.constant 0 : i32
    return %c0_i32, %c0_i32_0 : i32, i32
  }
  func.func @transform_6(%arg0: i32) -> (i32, i32, i32) {
    %c0_i32 = arith.constant 0 : i32
    %c0_i32_0 = arith.constant 0 : i32
    %c0_i32_1 = arith.constant 0 : i32
    return %arg0, %c0_i32, %c0_i32_0 : i32, i32, i32
  }
}

</mosaic_0001>

<llo_original>
// kernel: tile.63
$region0: #{tile.63}
  #allocation0 [shape = 's32[1]{0}', space=sflag, size = 0x4, scoped, tag = 'scoped memory for tile.63']
  %s0 = inlined_call_operand.vmem [shape: f32[16], index: 0, kind: input, shape index: {}]
  %s1 = inlined_call_operand.vmem [shape: f32[16,16], index: 1, kind: output, shape index: {}]
  // Predicated region
  $region2: #{tile.63} parent=0 // pred_check
    _
  $region3: #{tile.63} parent=0 // pred_check_branch
    %3 = sbr.rel (0) target = $region5
  $region4: #{tile.63} parent=0 // pred_region
    _
  $region5: #{tile.63} parent=0 // pred_fallthru
    _
  %v4 = vld [vmem:[%s0] ss:$0 sm:$0xff]
  %5 = vst [vmem:[%s1] sm:$0xff] %v4
  %s6 = scalar_lea.vmem %s1, 8
  %7 = vst [vmem:[%s6] sm:$0xff] %v4

// kernel: tile.108
$region0: #{tile.108}
  %s0 = inlined_call_operand.vmem [shape: f32[16,16], index: 0, kind: input, shape index: {}]
  %s1 = inlined_call_operand.vmem [shape: f32[1,256], index: 1, kind: output, shape index: {}]
  $region1: #{tile.108} parent=0
    #allocation0 [shape = 'u8[8192]{0}', space=vmem, size = 0x2000, scoped, tag = 'scoped mem for output reshape']
    %s2 = smov 3
    %v3 = vld [vmem:[%s0] ss:$8 sm:%s2]
    %vm4 = vcmask 130048
    %5 = vst.msk [vmem:[#allocation0] ss:$8 sm:$0x3] %vm4, %v3
    %s6 = scalar_lea.vmem %s0, 7
    %s7 = smov 3
    %v8 = vld [vmem:[%s6] ss:$8 sm:%s7]
    %9 = vrot.lane.b32.xlu0 %v8, 112
    %v10 = vpop.permute.xlu0 %9
    %vm11 = vcmask 1048448
    %12 = vst.msk [vmem:[#allocation0] ss:$8 sm:$0x3] %vm11, %v10
    %s13 = scalar_lea.vmem %s0, 6
    %s14 = smov 3
    %v15 = vld [vmem:[%s13] ss:$8 sm:%s14]
    %16 = vrot.lane.b32.xlu0 %v15, 96
    %v17 = vpop.permute.xlu0 %16
    %vm18 = vcmask 917248
    %19 = vst.msk [vmem:[#allocation0] ss:$8 sm:$0x3] %vm18, %v17
    %s20 = scalar_lea.vmem %s0, 5
    %s21 = smov 3
    %v22 = vld [vmem:[%s20] ss:$8 sm:%s21]
    %23 = vrot.lane.b32.xlu0 %v22, 80
    %v24 = vpop.permute.xlu0 %23
    %vm25 = vcmask 786048
    %26 = vst.msk [vmem:[#allocation0] ss:$8 sm:$0x3] %vm25, %v24
    %s27 = scalar_lea.vmem %s0, 4
    %s28 = smov 3
    %v29 = vld [vmem:[%s27] ss:$8 sm:%s28]
    %30 = vrot.lane.b32.xlu0 %v29, 64
    %v31 = vpop.permute.xlu0 %30
    %vm32 = vcmask 654848
    %33 = vst.msk [vmem:[#allocation0] ss:$8 sm:$0x3] %vm32, %v31
    %s34 = scalar_lea.vmem %s0, 3
    %s35 = smov 3
    %v36 = vld [vmem:[%s34] ss:$8 sm:%s35]
    %37 = vrot.lane.b32.xlu0 %v36, 48
    %v38 = vpop.permute.xlu0 %37
    %vm39 = vcmask 523648
    %40 = vst.msk [vmem:[#allocation0] ss:$8 sm:$0x3] %vm39, %v38
    %s41 = scalar_lea.vmem %s0, 2
    %s42 = smov 3
    %v43 = vld [vmem:[%s41] ss:$8 sm:%s42]
    %44 = vrot.lane.b32.xlu0 %v43, 32
    %v45 = vpop.permute.xlu0 %44
    %vm46 = vcmask 392448
    %47 = vst.msk [vmem:[#allocation0] ss:$8 sm:$0x3] %vm46, %v45
    %s48 = scalar_lea.vmem %s0, 1
    %s49 = smov 3
    %v50 = vld [vmem:[%s48] ss:$8 sm:%s49]
    %51 = vrot.lane.b32.xlu0 %v50, 16
    %v52 = vpop.permute.xlu0 %51
    %vm53 = vcmask 261248
    %54 = vst.msk [vmem:[#allocation0] ss:$8 sm:$0x3] %vm53, %v52
    %s56 = ssub.s32 2, 1
    %v57 = vld [vmem:[#allocation0] sm:%s56]
    %s59 = ssub.s32 2, 1
    %60 = vst [vmem:[%s1] sm:%s59] %v57
    %s61 = scalar_lea.vmem [#allocation0], 8
    %v62 = vld [vmem:[%s61] sm:%s56]
    %s64 = ssub.s32 2, 1
    %s65 = scalar_lea.vmem %s1, 1
    %66 = vst [vmem:[%s65] sm:%s64] %v62

// kernel: upblock_forward.1
$region0: #{upblock_forward.1}
  #allocation0 [shape = 'u32[]', space=smem, size = 0x4, offset = 0x4, fixed_abs, tag = 'smem constant byte address 0x4 - core index']
  #allocation1 [shape = 'u32[72,128]{1,0:T(1,128)}', space=vmem, size = 0x9000, scoped, tag = 'internal scratch']
  #allocation2 [shape = 'f32[18,192]{1,0:T(8,128)}', space=vmem, size = 0x6000, scoped, tag = 'scratch operand']
  #allocation3 [shape = 'f32[20,256]{1,0:T(8,128)}', space=vmem, size = 0x6000, scoped, tag = 'scratch operand']
  #allocation4 [shape = 'f32[18,256]{1,0:T(8,128)}', space=vmem, size = 0x6000, scoped, tag = 'scratch operand']
  %s0 = inlined_call_operand.vmem [shape: f32[2,16,192], index: 0, kind: input, shape index: {}]
  %s1 = inlined_call_operand.vmem [shape: f32[3,192,256], index: 1, kind: input, shape index: {}]
  %s2 = inlined_call_operand.vmem [shape: f32[3,256,256], index: 2, kind: input, shape index: {}]
  %s3 = inlined_call_operand.vmem [shape: f32[2,256,256], index: 3, kind: input, shape index: {}]
  %s4 = inlined_call_operand.vmem [shape: f32[3,256,256], index: 4, kind: input, shape index: {}]
  %s5 = inlined_call_operand.vmem [shape: f32[12,256], index: 5, kind: input, shape index: {}]
  %s6 = inlined_call_operand.vmem [shape: f32[2,16,256], index: 6, kind: output, shape index: {}]
  %s7 = sld [smem:[#allocation0]]
  $region57: #{upblock_forward.1} parent=0
    _
  %s9 = ssub.s32 1, %s7
  %s10 = scalar_select 0, %s9, %s7
  loop: start=0, step=1, limit=4
  $region2: #{upblock_forward.1} parent=0 // loop_pre_header
    _
  $region3: #{upblock_forward.1} parent=0 // loop_header
    %s12 = sphi 0, %s16
    %p13 = scmp.ge.s32.totalorder %s12, 4
    %s22 = sphi 0, %s24
    %s25 = sphi 0, %s22
    %s26 = sphi 0, %s25
    %s42 = sphi 0, %s26
    %s46 = sphi 0, %s46
    %s48 = sphi 0, %s46
    %s49 = sphi 0, %s48
    %s63 = sphi 0, %s49
    %s67 = sphi 0, %s67
    %s69 = sphi 0, %s67
    %s70 = sphi 0, %s69
    %s84 = sphi 0, %s70
    %s88 = sphi 0, %s88
    %s90 = sphi 0, %s88
    %s91 = sphi 0, %s90
    %s105 = sphi 0, %s91
    %s109 = sphi 0, %s109
    %s111 = sphi 0, %s109
    %s112 = sphi 0, %s111
    %s126 = sphi 0, %s112
    %s130 = sphi 0, %s130
    %s132 = sphi 0, %s130
    %s133 = sphi 0, %s132
    %s147 = sphi 0, %s133
    %s153 = sphi 0, %s155
    %s156 = sphi 0, %s153
    %s157 = sphi 0, %s156
    %s173 = sphi 0, %s157
  $region4: #{upblock_forward.1} parent=0 // loop_header_branch
    %15 = sbr.rel (%p13) target = $region8
  $region5: #{upblock_forward.1} parent=0 // loop_body
    %s17 = ssub.s32 %s12, 1
    %s18 = ssub.s32 %s12, 2
    %s19 = sadd.s32 %s12, 1
    %s20 = ssub.s32 %s12, %s19
    %p21 = scmp.eq.s32.totalorder %s20, 0
    %s23 = sadd.s32 %s22, 1
    %s24 = scalar_select %p21, %s22, %s23
    %p27 = pneg %p21
    %p28 = scmp.eq.s32.totalorder %s12, 1
    %p29 = por %p27, %p28
    %p30 = scmp.ne.s32.totalorder %s22, %s25
    %p31 = scmp.eq.s32.totalorder %s12, 0
    %p32 = por %p30, %p31
    %p33 = scmp.ne.s32.totalorder %s22, %s25
    %p34 = scmp.eq.s32.totalorder %s17, 1
    %p35 = por %p33, %p34
    %p36 = scmp.ne.s32.totalorder %s25, %s26
    %p37 = scmp.eq.s32.totalorder %s17, 0
    %p38 = por %p36, %p37
    %p39 = scmp.ne.s32.totalorder %s25, %s26
    %p40 = scmp.eq.s32.totalorder %s18, 1
    %p41 = por %p39, %p40
    %p43 = scmp.ne.s32.totalorder %s26, %s42
    %p44 = scmp.eq.s32.totalorder %s18, 0
    %p45 = por %p43, %p44
    %s47 = sadd.s32 %s46, 1
    %p50 = scmp.eq.s32.totalorder %s12, 1
    %p51 = scmp.ne.s32.totalorder %s46, %s48
    %p52 = scmp.eq.s32.totalorder %s12, 0
    %p53 = por %p51, %p52
    %p54 = scmp.ne.s32.totalorder %s46, %s48
    %p55 = scmp.eq.s32.totalorder %s17, 1
    %p56 = por %p54, %p55
    %p57 = scmp.ne.s32.totalorder %s48, %s49
    %p58 = scmp.eq.s32.totalorder %s17, 0
    %p59 = por %p57, %p58
    %p60 = scmp.ne.s32.totalorder %s48, %s49
    %p61 = scmp.eq.s32.totalorder %s18, 1
    %p62 = por %p60, %p61
    %p64 = scmp.ne.s32.totalorder %s49, %s63
    %p65 = scmp.eq.s32.totalorder %s18, 0
    %p66 = por %p64, %p65
    %s68 = sadd.s32 %s67, 1
    %p71 = scmp.eq.s32.totalorder %s12, 1
    %p72 = scmp.ne.s32.totalorder %s67, %s69
    %p73 = scmp.eq.s32.totalorder %s12, 0
    %p74 = por %p72, %p73
    %p75 = scmp.ne.s32.totalorder %s67, %s69
    %p76 = scmp.eq.s32.totalorder %s17, 1
    %p77 = por %p75, %p76
    %p78 = scmp.ne.s32.totalorder %s69, %s70
    %p79 = scmp.eq.s32.totalorder %s17, 0
    %p80 = por %p78, %p79
    %p81 = scmp.ne.s32.totalorder %s69, %s70
    %p82 = scmp.eq.s32.totalorder %s18, 1
    %p83 = por %p81, %p82
    %p85 = scmp.ne.s32.totalorder %s70, %s84
    %p86 = scmp.eq.s32.totalorder %s18, 0
    %p87 = por %p85, %p86
    %s89 = sadd.s32 %s88, 1
    %p92 = scmp.eq.s32.totalorder %s12, 1
    %p93 = scmp.ne.s32.totalorder %s88, %s90
    %p94 = scmp.eq.s32.totalorder %s12, 0
    %p95 = por %p93, %p94
    %p96 = scmp.ne.s32.totalorder %s88, %s90
    %p97 = scmp.eq.s32.totalorder %s17, 1
    %p98 = por %p96, %p97
    %p99 = scmp.ne.s32.totalorder %s90, %s91
    %p100 = scmp.eq.s32.totalorder %s17, 0
    %p101 = por %p99, %p100
    %p102 = scmp.ne.s32.totalorder %s90, %s91
    %p103 = scmp.eq.s32.totalorder %s18, 1
    %p104 = por %p102, %p103
    %p106 = scmp.ne.s32.totalorder %s91, %s105
    %p107 = scmp.eq.s32.totalorder %s18, 0
    %p108 = por %p106, %p107
    %s110 = sadd.s32 %s109, 1
    %p113 = scmp.eq.s32.totalorder %s12, 1
    %p114 = scmp.ne.s32.totalorder %s109, %s111
    %p115 = scmp.eq.s32.totalorder %s12, 0
    %p116 = por %p114, %p115
    %p117 = scmp.ne.s32.totalorder %s109, %s111
    %p118 = scmp.eq.s32.totalorder %s17, 1
    %p119 = por %p117, %p118
    %p120 = scmp.ne.s32.totalorder %s111, %s112
    %p121 = scmp.eq.s32.totalorder %s17, 0
    %p122 = por %p120, %p121
    %p123 = scmp.ne.s32.totalorder %s111, %s112
    %p124 = scmp.eq.s32.totalorder %s18, 1
    %p125 = por %p123, %p124
    %p127 = scmp.ne.s32.totalorder %s112, %s126
    %p128 = scmp.eq.s32.totalorder %s18, 0
    %p129 = por %p127, %p128
    %s131 = sadd.s32 %s130, 1
    %p134 = scmp.eq.s32.totalorder %s12, 1
    %p135 = scmp.ne.s32.totalorder %s130, %s132
    %p136 = scmp.eq.s32.totalorder %s12, 0
    %p137 = por %p135, %p136
    %p138 = scmp.ne.s32.totalorder %s130, %s132
    %p139 = scmp.eq.s32.totalorder %s17, 1
    %p140 = por %p138, %p139
    %p141 = scmp.ne.s32.totalorder %s132, %s133
    %p142 = scmp.eq.s32.totalorder %s17, 0
    %p143 = por %p141, %p142
    %p144 = scmp.ne.s32.totalorder %s132, %s133
    %p145 = scmp.eq.s32.totalorder %s18, 1
    %p146 = por %p144, %p145
    %p148 = scmp.ne.s32.totalorder %s133, %s147
    %p149 = scmp.eq.s32.totalorder %s18, 0
    %p150 = por %p148, %p149
    %s151 = ssub.s32 %s12, %s19
    %p152 = scmp.eq.s32.totalorder %s151, 0
    %s154 = sadd.s32 %s153, 1
    %s155 = scalar_select %p152, %s153, %s154
    %p158 = pneg %p152
    %p159 = scmp.eq.s32.totalorder %s12, 1
    %p160 = por %p158, %p159
    %p161 = scmp.ne.s32.totalorder %s153, %s156
    %p162 = scmp.eq.s32.totalorder %s12, 0
    %p163 = por %p161, %p162
    %p164 = scmp.ne.s32.totalorder %s153, %s156
    %p165 = scmp.eq.s32.totalorder %s17, 1
    %p166 = por %p164, %p165
    %p167 = scmp.ne.s32.totalorder %s156, %s157
    %p168 = scmp.eq.s32.totalorder %s17, 0
    %p169 = por %p167, %p168
    %p170 = scmp.ne.s32.totalorder %s156, %s157
    %p171 = scmp.eq.s32.totalorder %s18, 1
    %p172 = por %p170, %p171
    %p174 = scmp.ne.s32.totalorder %s157, %s173
    %p175 = scmp.eq.s32.totalorder %s18, 0
    %p176 = por %p174, %p175
    %p177 = scmp.le.s32.totalorder 1, %s12
    %p178 = scmp.lt.s32.totalorder %s12, 3
    %p179 = pnand %p177, %p178
    %p180 = pneg %p179
    // Predicated region
    $region9: #{upblock_forward.1} parent=5 // pred_check
      _
    $region10: #{upblock_forward.1} parent=5 // pred_check_branch
      %182 = sbr.rel (%p179) target = $region12
    $region11: #{upblock_forward.1} parent=5 // pred_region
      %s183 = ssub.s32 %s12, 1
      // Predicated region
      $region13: #{upblock_forward.1} parent=11 // pred_check
        %p184 = pneg %p59
      $region14: #{upblock_forward.1} parent=11 // pred_check_branch
        %186 = sbr.rel (%p184) target = $region16
      $region15: #{upblock_forward.1} parent=11 // pred_region
        _
      $region16: #{upblock_forward.1} parent=11 // pred_fallthru
        _
      // Predicated region
      $region17: #{upblock_forward.1} parent=11 // pred_check
        %p187 = pneg %p80
      $region18: #{upblock_forward.1} parent=11 // pred_check_branch
        %189 = sbr.rel (%p187) target = $region20
      $region19: #{upblock_forward.1} parent=11 // pred_region
        _
      $region20: #{upblock_forward.1} parent=11 // pred_fallthru
        _
      // Predicated region
      $region21: #{upblock_forward.1} parent=11 // pred_check
        %p190 = pneg %p101
      $region22: #{upblock_forward.1} parent=11 // pred_check_branch
        %192 = sbr.rel (%p190) target = $region24
      $region23: #{upblock_forward.1} parent=11 // pred_region
        _
      $region24: #{upblock_forward.1} parent=11 // pred_fallthru
        _
      // Predicated region
      $region25: #{upblock_forward.1} parent=11 // pred_check
        %p193 = pneg %p122
      $region26: #{upblock_forward.1} parent=11 // pred_check_branch
        %195 = sbr.rel (%p193) target = $region28
      $region27: #{upblock_forward.1} parent=11 // pred_region
        _
      $region28: #{upblock_forward.1} parent=11 // pred_fallthru
        _
      // Predicated region
      $region29: #{upblock_forward.1} parent=11 // pred_check
        %p196 = pneg %p143
      $region30: #{upblock_forward.1} parent=11 // pred_check_branch
        %198 = sbr.rel (%p196) target = $region32
      $region31: #{upblock_forward.1} parent=11 // pred_region
        _
      $region32: #{upblock_forward.1} parent=11 // pred_fallthru
        _
    $region12: #{upblock_forward.1} parent=5 // pred_fallthru
      _
    %p199 = scmp.lt.s32.totalorder %s12, 2
    // Predicated region
    $region33: #{upblock_forward.1} parent=5 // pred_check
      %p200 = pneg %p199
    $region34: #{upblock_forward.1} parent=5 // pred_check_branch
      %202 = sbr.rel (%p200) target = $region36
    $region35: #{upblock_forward.1} parent=5 // pred_region
      // Predicated region
      $region37: #{upblock_forward.1} parent=35 // pred_check
        %p203 = pneg %p32
      $region38: #{upblock_forward.1} parent=35 // pred_check_branch
        %205 = sbr.rel (%p203) target = $region40
      $region39: #{upblock_forward.1} parent=35 // pred_region
        %p206 = scmp.lt.s32.totalorder %s12, 1
        %s207 = scalar_select %p206, %s12, 1
        %s208 = smul.addr %s207, 4
        %s209 = smul.addr %s208, 8
        %s210 = scalar_lea.vmem %s0, %s209
      $region40: #{upblock_forward.1} parent=35 // pred_fallthru
        _
    $region36: #{upblock_forward.1} parent=5 // pred_fallthru
      _
    %p211 = scmp.le.s32.totalorder 1, %s12
    %p212 = scmp.lt.s32.totalorder %s12, 3
    %p213 = pnand %p211, %p212
    %p214 = pneg %p213
    // Predicated region
    $region41: #{upblock_forward.1} parent=5 // pred_check
      _
    $region42: #{upblock_forward.1} parent=5 // pred_check_branch
      %216 = sbr.rel (%p213) target = $region44
    $region43: #{upblock_forward.1} parent=5 // pred_region
      %s217 = ssub.s32 %s12, 1
      %p218 = scmp.lt.s32.totalorder %s17, 1
      %s219 = scalar_select %p218, %s17, 1
      %s220 = smul.addr %s219, 4
      %s221 = smul.addr %s220, 8
      %s222 = scalar_lea.vmem %s0, %s221
      %p223 = pneg %p38
      %p224 = pneg %p35
      %p225 = pneg %p59
      %p226 = pneg %p56
      %p227 = pneg %p80
      %p228 = pneg %p77
      %p229 = pneg %p101
      %p230 = pneg %p98
      %p231 = pneg %p122
      %p232 = pneg %p119
      %p233 = pneg %p143
      %p234 = pneg %p140
      %p235 = pneg %p169
      %p236 = pneg %p166
      %p237 = scmp.lt.s32.totalorder %s17, 1
      %s238 = scalar_select %p237, %s17, 1
      %s239 = smul.addr %s238, 4
      %s240 = smul.addr %s239, 8
      %s241 = scalar_lea.vmem %s6, %s240
      %p242 = scmp.lt.s32.totalorder %s17, 1
      %s243 = scalar_select %p242, %s17, 1
      %s244 = smul.addr %s243, 4
      %s245 = smul.addr %s244, 8
      %s246 = scalar_lea.vmem %s0, %s245
      %p247 = scmp.lt.s32.totalorder %s17, 1
      %s248 = scalar_select %p247, %s17, 1
      %s249 = smul.addr %s248, 4
      %s250 = smul.addr %s249, 8
      %s251 = scalar_lea.vmem %s6, %s250
      %252 = vst [vmem:[#allocation2] sm:$0xff] 0.0
      %vm253 = vcmask 523264
      %254 = vst.msk [vmem:[#allocation2 + $0x8] sm:$0xff] %vm253, 0.0
      %255 = vst [vmem:[#allocation2 + $0x10] sm:$0xff] 0.0
      %256 = vst.msk [vmem:[#allocation2 + $0x18] sm:$0xff] %vm253, 0.0
      %257 = vst [vmem:[#allocation2 + $0x20] sm:$0x3] 0.0
      %vm258 = vcmask 517120
      %259 = vst.msk [vmem:[#allocation2 + $0x28] sm:$0x3] %vm258, 0.0
      %v260 = vld [vmem:[%s246] sm:$0xff]
      %v261 = vld [vmem:[%s246 + $0x8] sm:$0xff]
      %v262 = vld [vmem:[%s246 + $0x10] sm:$0xff]
      %v263 = vld [vmem:[%s246 + $0x18] sm:$0xff]
      %vm268 = vcmask 1040384
      %v269 = vrot.slane %v260, 7
      %v270 = vrot.slane %v261, 7
      %v271 = vrot.slane %v262, 7
      %v272 = vsel %vm268, %v269, %v271
      %v273 = vrot.slane %v263, 7
      %v274 = vsel %vm268, %v270, %v273
      %281 = vst [vmem:[#allocation2] sm:$0xfe] %v269
      %vm282 = vcmask 523265
      %283 = vst.msk [vmem:[#allocation2 + $0x8] sm:$0xfe] %vm282, %v270
      %284 = vst [vmem:[#allocation2 + $0x10] sm:$0xff] %v272
      %285 = vst.msk [vmem:[#allocation2 + $0x18] sm:$0xff] %vm253, %v274
      %286 = vst [vmem:[#allocation2 + $0x20] sm:$0x1] %v271
      %vm287 = vcmask 516096
      %288 = vst.msk [vmem:[#allocation2 + $0x28] sm:$0x1] %vm287, %v273
      %v289 = vld [vmem:[#allocation2] sm:$0xff]
      %v290 = vld [vmem:[#allocation2 + $0x8] sm:$0xff]
      %v291 = vld [vmem:[#allocation2 + $0x10] sm:$0xff]
      %v292 = vld [vmem:[#allocation2 + $0x18] sm:$0xff]
      %v293 = vld [vmem:[%s1] sm:$0xff]
      %v294 = vld [vmem:[%s1 + $0x8] sm:$0xff]
      %v295 = vld [vmem:[%s1 + $0x10] sm:$0xff]
      %v296 = vld [vmem:[%s1 + $0x18] sm:$0xff]
      %v297 = vld [vmem:[%s1 + $0x20] sm:$0xff]
      %v298 = vld [vmem:[%s1 + $0x28] sm:$0xff]
      %v299 = vld [vmem:[%s1 + $0x30] sm:$0xff]
      %v300 = vld [vmem:[%s1 + $0x38] sm:$0xff]
      %v301 = vld [vmem:[%s1 + $0x40] sm:$0xff]
      %v302 = vld [vmem:[%s1 + $0x48] sm:$0xff]
      %v303 = vld [vmem:[%s1 + $0x50] sm:$0xff]
      %v304 = vld [vmem:[%s1 + $0x58] sm:$0xff]
      %v305 = vld [vmem:[%s1 + $0x60] sm:$0xff]
      %v306 = vld [vmem:[%s1 + $0x68] sm:$0xff]
      %v307 = vld [vmem:[%s1 + $0x70] sm:$0xff]
      %v308 = vld [vmem:[%s1 + $0x78] sm:$0xff]
      %v309 = vld [vmem:[%s1 + $0x80] sm:$0xff]
      %v310 = vld [vmem:[%s1 + $0x88] sm:$0xff]
      %v311 = vld [vmem:[%s1 + $0x90] sm:$0xff]
      %v312 = vld [vmem:[%s1 + $0x98] sm:$0xff]
      %v313 = vld [vmem:[%s1 + $0xa0] sm:$0xff]
      %v314 = vld [vmem:[%s1 + $0xa8] sm:$0xff]
      %v315 = vld [vmem:[%s1 + $0xb0] sm:$0xff]
      %v316 = vld [vmem:[%s1 + $0xb8] sm:$0xff]
      %v317 = vld [vmem:[%s1 + $0xc0] sm:$0xff]
      %v318 = vld [vmem:[%s1 + $0xc8] sm:$0xff]
      %v319 = vld [vmem:[%s1 + $0xd0] sm:$0xff]
      %v320 = vld [vmem:[%s1 + $0xd8] sm:$0xff]
      %v321 = vld [vmem:[%s1 + $0xe0] sm:$0xff]
      %v322 = vld [vmem:[%s1 + $0xe8] sm:$0xff]
      %v323 = vld [vmem:[%s1 + $0xf0] sm:$0xff]
      %v324 = vld [vmem:[%s1 + $0xf8] sm:$0xff]
      %v325 = vld [vmem:[%s1 + $0x100] sm:$0xff]
      %v326 = vld [vmem:[%s1 + $0x108] sm:$0xff]
      %v327 = vld [vmem:[%s1 + $0x110] sm:$0xff]
      %v328 = vld [vmem:[%s1 + $0x118] sm:$0xff]
      %v329 = vld [vmem:[%s1 + $0x120] sm:$0xff]
      %v330 = vld [vmem:[%s1 + $0x128] sm:$0xff]
      %v331 = vld [vmem:[%s1 + $0x130] sm:$0xff]
      %v332 = vld [vmem:[%s1 + $0x138] sm:$0xff]
      %v333 = vld [vmem:[%s1 + $0x140] sm:$0xff]
      %v334 = vld [vmem:[%s1 + $0x148] sm:$0xff]
      %v335 = vld [vmem:[%s1 + $0x150] sm:$0xff]
      %v336 = vld [vmem:[%s1 + $0x158] sm:$0xff]
      %v337 = vld [vmem:[%s1 + $0x160] sm:$0xff]
      %v338 = vld [vmem:[%s1 + $0x168] sm:$0xff]
      %v339 = vld [vmem:[%s1 + $0x170] sm:$0xff]
      %v340 = vld [vmem:[%s1 + $0x178] sm:$0xff]
      %v341 = vld [vmem:[#allocation2] sm:$0xfe]
      %v342 = vld [vmem:[#allocation2 + $0x8] sm:$0xfe]
      %v343 = vld [vmem:[#allocation2 + $0x20] sm:$0x1]
      %v344 = vld [vmem:[#allocation2 + $0x28] sm:$0x1]
      %s345 = scalar_lea.vmem %s1, 384
      %v346 = vld [vmem:[%s345] sm:$0xff]
      %v347 = vld [vmem:[%s345 + $0x8] sm:$0xff]
      %v348 = vld [vmem:[%s345 + $0x10] sm:$0xff]
      %v349 = vld [vmem:[%s345 + $0x18] sm:$0xff]
      %v350 = vld [vmem:[%s345 + $0x20] sm:$0xff]
      %v351 = vld [vmem:[%s345 + $0x28] sm:$0xff]
      %v352 = vld [vmem:[%s345 + $0x30] sm:$0xff]
      %v353 = vld [vmem:[%s345 + $0x38] sm:$0xff]
      %v354 = vld [vmem:[%s345 + $0x40] sm:$0xff]
      %v355 = vld [vmem:[%s345 + $0x48] sm:$0xff]
      %v356 = vld [vmem:[%s345 + $0x50] sm:$0xff]
      %v357 = vld [vmem:[%s345 + $0x58] sm:$0xff]
      %v358 = vld [vmem:[%s345 + $0x60] sm:$0xff]
      %v359 = vld [vmem:[%s345 + $0x68] sm:$0xff]
      %v360 = vld [vmem:[%s345 + $0x70] sm:$0xff]
      %v361 = vld [vmem:[%s345 + $0x78] sm:$0xff]
      %v362 = vld [vmem:[%s345 + $0x80] sm:$0xff]
      %v363 = vld [vmem:[%s345 + $0x88] sm:$0xff]
      %v364 = vld [vmem:[%s345 + $0x90] sm:$0xff]
      %v365 = vld [vmem:[%s345 + $0x98] sm:$0xff]
      %v366 = vld [vmem:[%s345 + $0xa0] sm:$0xff]
      %v367 = vld [vmem:[%s345 + $0xa8] sm:$0xff]
      %v368 = vld [vmem:[%s345 + $0xb0] sm:$0xff]
      %v369 = vld [vmem:[%s345 + $0xb8] sm:$0xff]
      %v370 = vld [vmem:[%s345 + $0xc0] sm:$0xff]
      %v371 = vld [vmem:[%s345 + $0xc8] sm:$0xff]
      %v372 = vld [vmem:[%s345 + $0xd0] sm:$0xff]
      %v373 = vld [vmem:[%s345 + $0xd8] sm:$0xff]
      %v374 = vld [vmem:[%s345 + $0xe0] sm:$0xff]
      %v375 = vld [vmem:[%s345 + $0xe8] sm:$0xff]
      %v376 = vld [vmem:[%s345 + $0xf0] sm:$0xff]
      %v377 = vld [vmem:[%s345 + $0xf8] sm:$0xff]
      %v378 = vld [vmem:[%s345 + $0x100] sm:$0xff]
      %v379 = vld [vmem:[%s345 + $0x108] sm:$0xff]
      %v380 = vld [vmem:[%s345 + $0x110] sm:$0xff]
      %v381 = vld [vmem:[%s345 + $0x118] sm:$0xff]
      %v382 = vld [vmem:[%s345 + $0x120] sm:$0xff]
      %v383 = vld [vmem:[%s345 + $0x128] sm:$0xff]
      %v384 = vld [vmem:[%s345 + $0x130] sm:$0xff]
      %v385 = vld [vmem:[%s345 + $0x138] sm:$0xff]
      %v386 = vld [vmem:[%s345 + $0x140] sm:$0xff]
      %v387 = vld [vmem:[%s345 + $0x148] sm:$0xff]
      %v388 = vld [vmem:[%s345 + $0x150] sm:$0xff]
      %v389 = vld [vmem:[%s345 + $0x158] sm:$0xff]
      %v390 = vld [vmem:[%s345 + $0x160] sm:$0xff]
      %v391 = vld [vmem:[%s345 + $0x168] sm:$0xff]
      %v392 = vld [vmem:[%s345 + $0x170] sm:$0xff]
      %v393 = vld [vmem:[%s345 + $0x178] sm:$0xff]
      %vm400 = vcmask 1046528
      %v401 = vrot.slane %v341, 1
      %v402 = vrot.slane %v291, 1
      %v403 = vsel %vm400, %v401, %v402
      %v404 = vrot.slane %v342, 1
      %v405 = vrot.slane %v292, 1
      %v406 = vsel %vm400, %v404, %v405
      %v407 = vrot.slane %v343, 1
      %v408 = vsel %vm400, %v402, %v407
      %v409 = vrot.slane %v344, 1
      %v410 = vsel %vm400, %v405, %v409
      %v413 = vsel %vm253, %v406, 0
      %v415 = vsel %vm253, %v410, 0
      %417 = vmatpush.msra.mxu0 %v376
      %418 = vmatpush.msra.mxu0 %v374
      %419 = vmatpush.msra.mxu0 %v372
      %420 = vmatpush.msra.mxu0 %v370
      %421 = vmatpush.msra.mxu0 %v368
      %422 = vmatpush.msra.mxu0 %v366
      %423 = vmatpush.msra.mxu0 %v364
      %424 = vmatpush.msra.mxu0 %v362
      %425 = vmatpush.msra.mxu0 %v360
      %426 = vmatpush.msra.mxu0 %v358
      %427 = vmatpush.msra.mxu0 %v356
      %428 = vmatpush.msra.mxu0 %v354
      %429 = vmatpush.msra.mxu0 %v352
      %430 = vmatpush.msra.mxu0 %v350
      %431 = vmatpush.msra.mxu0 %v348
      %432 = vmatpush.msra.mxu0 %v346
      %433 = vmatmul.f32.gmra.mxu0 %v403
      %v434 = vpop.f32.mrf.mxu0
      %v435 = vadd.f32 0.0, %v434
      %436 = vmatmul.f32.gmra.mxu0 %v408
      %v437 = vpop.f32.mrf.mxu0
      %v438 = vadd.f32 0.0, %v437
      %439 = vdwg.mxu0
      %440 = vmatpush.msra.mxu0 0.0
      %441 = vmatpush.msra.mxu0 0.0
      %442 = vmatpush.msra.mxu0 0.0
      %443 = vmatpush.msra.mxu0 0.0
      %444 = vmatpush.msra.mxu0 0.0
      %445 = vmatpush.msra.mxu0 0.0
      %446 = vmatpush.msra.mxu0 0.0
      %447 = vmatpush.msra.mxu0 0.0
      %448 = vmatpush.msra.mxu0 %v392
      %449 = vmatpush.msra.mxu0 %v390
      %450 = vmatpush.msra.mxu0 %v388
      %451 = vmatpush.msra.mxu0 %v386
      %452 = vmatpush.msra.mxu0 %v384
      %453 = vmatpush.msra.mxu0 %v382
      %454 = vmatpush.msra.mxu0 %v380
      %455 = vmatpush.msra.mxu0 %v378
      %456 = vmatmul.f32.gmra.mxu0 %v413
      %v457 = vpop.f32.mrf.mxu0
      %v458 = vadd.f32 %v435, %v457
      %459 = vmatmul.f32.gmra.mxu0 %v415
      %v460 = vpop.f32.mrf.mxu0
      %v461 = vadd.f32 %v438, %v460
      %462 = vdwg.mxu0
      %463 = vmatpush.msra.mxu0 %v377
      %464 = vmatpush.msra.mxu0 %v375
      %465 = vmatpush.msra.mxu0 %v373
      %466 = vmatpush.msra.mxu0 %v371
      %467 = vmatpush.msra.mxu0 %v369
      %468 = vmatpush.msra.mxu0 %v367
      %469 = vmatpush.msra.mxu0 %v365
      %470 = vmatpush.msra.mxu0 %v363
      %471 = vmatpush.msra.mxu0 %v361
      %472 = vmatpush.msra.mxu0 %v359
      %473 = vmatpush.msra.mxu0 %v357
      %474 = vmatpush.msra.mxu0 %v355
      %475 = vmatpush.msra.mxu0 %v353
      %476 = vmatpush.msra.mxu0 %v351
      %477 = vmatpush.msra.mxu0 %v349
      %478 = vmatpush.msra.mxu0 %v347
      %479 = vmatmul.f32.gmra.mxu0 %v403
      %v480 = vpop.f32.mrf.mxu0
      %v481 = vadd.f32 0.0, %v480
      %482 = vmatmul.f32.gmra.mxu0 %v408
      %v483 = vpop.f32.mrf.mxu0
      %v484 = vadd.f32 0.0, %v483
      %485 = vdwg.mxu0
      %486 = vmatpush.msra.mxu0 0.0
      %487 = vmatpush.msra.mxu0 0.0
      %488 = vmatpush.msra.mxu0 0.0
      %489 = vmatpush.msra.mxu0 0.0
      %490 = vmatpush.msra.mxu0 0.0
      %491 = vmatpush.msra.mxu0 0.0
      %492 = vmatpush.msra.mxu0 0.0
      %493 = vmatpush.msra.mxu0 0.0
      %494 = vmatpush.msra.mxu0 %v393
      %495 = vmatpush.msra.mxu0 %v391
      %496 = vmatpush.msra.mxu0 %v389
      %497 = vmatpush.msra.mxu0 %v387
      %498 = vmatpush.msra.mxu0 %v385
      %499 = vmatpush.msra.mxu0 %v383
      %500 = vmatpush.msra.mxu0 %v381
      %501 = vmatpush.msra.mxu0 %v379
      %502 = vmatmul.f32.gmra.mxu0 %v413
      %v503 = vpop.f32.mrf.mxu0
      %v504 = vadd.f32 %v481, %v503
      %505 = vmatmul.f32.gmra.mxu0 %v415
      %v506 = vpop.f32.mrf.mxu0
      %v507 = vadd.f32 %v484, %v506
      %508 = vdwg.mxu0
      %v510 = vsel %vm253, %v290, 0
      %v512 = vsel %vm253, %v292, 0
      %514 = vmatpush.msra.mxu0 %v323
      %515 = vmatpush.msra.mxu0 %v321
      %516 = vmatpush.msra.mxu0 %v319
      %517 = vmatpush.msra.mxu0 %v317
      %518 = vmatpush.msra.mxu0 %v315
      %519 = vmatpush.msra.mxu0 %v313
      %520 = vmatpush.msra.mxu0 %v311
      %521 = vmatpush.msra.mxu0 %v309
      %522 = vmatpush.msra.mxu0 %v307
      %523 = vmatpush.msra.mxu0 %v305
      %524 = vmatpush.msra.mxu0 %v303
      %525 = vmatpush.msra.mxu0 %v301
      %526 = vmatpush.msra.mxu0 %v299
      %527 = vmatpush.msra.mxu0 %v297
      %528 = vmatpush.msra.mxu0 %v295
      %529 = vmatpush.msra.mxu0 %v293
      %530 = vmatmul.f32.gmra.mxu0 %v289
      %v531 = vpop.f32.mrf.mxu0
      %v532 = vadd.f32 %v458, %v531
      %533 = vmatmul.f32.gmra.mxu0 %v291
      %v534 = vpop.f32.mrf.mxu0
      %v535 = vadd.f32 %v461, %v534
      %536 = vdwg.mxu0
      %537 = vmatpush.msra.mxu0 0.0
      %538 = vmatpush.msra.mxu0 0.0
      %539 = vmatpush.msra.mxu0 0.0
      %540 = vmatpush.msra.mxu0 0.0
      %541 = vmatpush.msra.mxu0 0.0
      %542 = vmatpush.msra.mxu0 0.0
      %543 = vmatpush.msra.mxu0 0.0
      %544 = vmatpush.msra.mxu0 0.0
      %545 = vmatpush.msra.mxu0 %v339
      %546 = vmatpush.msra.mxu0 %v337
      %547 = vmatpush.msra.mxu0 %v335
      %548 = vmatpush.msra.mxu0 %v333
      %549 = vmatpush.msra.mxu0 %v331
      %550 = vmatpush.msra.mxu0 %v329
      %551 = vmatpush.msra.mxu0 %v327
      %552 = vmatpush.msra.mxu0 %v325
      %553 = vmatmul.f32.gmra.mxu0 %v510
      %v554 = vpop.f32.mrf.mxu0
      %v555 = vadd.f32 %v532, %v554
      %556 = vmatmul.f32.gmra.mxu0 %v512
      %v557 = vpop.f32.mrf.mxu0
      %v558 = vadd.f32 %v535, %v557
      %559 = vdwg.mxu0
      %560 = vmatpush.msra.mxu0 %v324
      %561 = vmatpush.msra.mxu0 %v322
      %562 = vmatpush.msra.mxu0 %v320
      %563 = vmatpush.msra.mxu0 %v318
      %564 = vmatpush.msra.mxu0 %v316
      %565 = vmatpush.msra.mxu0 %v314
      %566 = vmatpush.msra.mxu0 %v312
      %567 = vmatpush.msra.mxu0 %v310
      %568 = vmatpush.msra.mxu0 %v308
      %569 = vmatpush.msra.mxu0 %v306
      %570 = vmatpush.msra.mxu0 %v304
      %571 = vmatpush.msra.mxu0 %v302
      %572 = vmatpush.msra.mxu0 %v300
      %573 = vmatpush.msra.mxu0 %v298
      %574 = vmatpush.msra.mxu0 %v296
      %575 = vmatpush.msra.mxu0 %v294
      %576 = vmatmul.f32.gmra.mxu0 %v289
      %v577 = vpop.f32.mrf.mxu0
      %v578 = vadd.f32 %v504, %v577
      %579 = vmatmul.f32.gmra.mxu0 %v291
      %v580 = vpop.f32.mrf.mxu0
      %v581 = vadd.f32 %v507, %v580
      %582 = vdwg.mxu0
      %583 = vmatpush.msra.mxu0 0.0
      %584 = vmatpush.msra.mxu0 0.0
      %585 = vmatpush.msra.mxu0 0.0
      %586 = vmatpush.msra.mxu0 0.0
      %587 = vmatpush.msra.mxu0 0.0
      %588 = vmatpush.msra.mxu0 0.0
      %589 = vmatpush.msra.mxu0 0.0
      %590 = vmatpush.msra.mxu0 0.0
      %591 = vmatpush.msra.mxu0 %v340
      %592 = vmatpush.msra.mxu0 %v338
      %593 = vmatpush.msra.mxu0 %v336
      %594 = vmatpush.msra.mxu0 %v334
      %595 = vmatpush.msra.mxu0 %v332
      %596 = vmatpush.msra.mxu0 %v330
      %597 = vmatpush.msra.mxu0 %v328
      %598 = vmatpush.msra.mxu0 %v326
      %599 = vmatmul.f32.gmra.mxu0 %v510
      %v600 = vpop.f32.mrf.mxu0
      %v601 = vadd.f32 %v578, %v600
      %602 = vmatmul.f32.gmra.mxu0 %v512
      %v603 = vpop.f32.mrf.mxu0
      %v604 = vadd.f32 %v581, %v603
      %605 = vdwg.mxu0
      %v606 = vld [vmem:[#allocation2] sm:$0xfc]
      %v607 = vld [vmem:[#allocation2 + $0x8] sm:$0xfc]
      %v608 = vld [vmem:[#allocation2 + $0x20] sm:$0x3]
      %v609 = vld [vmem:[#allocation2 + $0x28] sm:$0x3]
      %s610 = scalar_lea.vmem %s1, 768
      %v611 = vld [vmem:[%s610] sm:$0xff]
      %v612 = vld [vmem:[%s610 + $0x8] sm:$0xff]
      %v613 = vld [vmem:[%s610 + $0x10] sm:$0xff]
      %v614 = vld [vmem:[%s610 + $0x18] sm:$0xff]
      %v615 = vld [vmem:[%s610 + $0x20] sm:$0xff]
      %v616 = vld [vmem:[%s610 + $0x28] sm:$0xff]
      %v617 = vld [vmem:[%s610 + $0x30] sm:$0xff]
      %v618 = vld [vmem:[%s610 + $0x38] sm:$0xff]
      %v619 = vld [vmem:[%s610 + $0x40] sm:$0xff]
      %v620 = vld [vmem:[%s610 + $0x48] sm:$0xff]
      %v621 = vld [vmem:[%s610 + $0x50] sm:$0xff]
      %v622 = vld [vmem:[%s610 + $0x58] sm:$0xff]
      %v623 = vld [vmem:[%s610 + $0x60] sm:$0xff]
      %v624 = vld [vmem:[%s610 + $0x68] sm:$0xff]
      %v625 = vld [vmem:[%s610 + $0x70] sm:$0xff]
      %v626 = vld [vmem:[%s610 + $0x78] sm:$0xff]
      %v627 = vld [vmem:[%s610 + $0x80] sm:$0xff]
      %v628 = vld [vmem:[%s610 + $0x88] sm:$0xff]
      %v629 = vld [vmem:[%s610 + $0x90] sm:$0xff]
      %v630 = vld [vmem:[%s610 + $0x98] sm:$0xff]
      %v631 = vld [vmem:[%s610 + $0xa0] sm:$0xff]
      %v632 = vld [vmem:[%s610 + $0xa8] sm:$0xff]
      %v633 = vld [vmem:[%s610 + $0xb0] sm:$0xff]
      %v634 = vld [vmem:[%s610 + $0xb8] sm:$0xff]
      %v635 = vld [vmem:[%s610 + $0xc0] sm:$0xff]
      %v636 = vld [vmem:[%s610 + $0xc8] sm:$0xff]
      %v637 = vld [vmem:[%s610 + $0xd0] sm:$0xff]
      %v638 = vld [vmem:[%s610 + $0xd8] sm:$0xff]
      %v639 = vld [vmem:[%s610 + $0xe0] sm:$0xff]
      %v640 = vld [vmem:[%s610 + $0xe8] sm:$0xff]
      %v641 = vld [vmem:[%s610 + $0xf0] sm:$0xff]
      %v642 = vld [vmem:[%s610 + $0xf8] sm:$0xff]
      %v643 = vld [vmem:[%s610 + $0x100] sm:$0xff]
      %v644 = vld [vmem:[%s610 + $0x108] sm:$0xff]
      %v645 = vld [vmem:[%s610 + $0x110] sm:$0xff]
      %v646 = vld [vmem:[%s610 + $0x118] sm:$0xff]
      %v647 = vld [vmem:[%s610 + $0x120] sm:$0xff]
      %v648 = vld [vmem:[%s610 + $0x128] sm:$0xff]
      %v649 = vld [vmem:[%s610 + $0x130] sm:$0xff]
      %v650 = vld [vmem:[%s610 + $0x138] sm:$0xff]
      %v651 = vld [vmem:[%s610 + $0x140] sm:$0xff]
      %v652 = vld [vmem:[%s610 + $0x148] sm:$0xff]
      %v653 = vld [vmem:[%s610 + $0x150] sm:$0xff]
      %v654 = vld [vmem:[%s610 + $0x158] sm:$0xff]
      %v655 = vld [vmem:[%s610 + $0x160] sm:$0xff]
      %v656 = vld [vmem:[%s610 + $0x168] sm:$0xff]
      %v657 = vld [vmem:[%s610 + $0x170] sm:$0xff]
      %v658 = vld [vmem:[%s610 + $0x178] sm:$0xff]
      %vm663 = vcmask 1045504
      %v664 = vrot.slane %v606, 2
      %v665 = vrot.slane %v291, 2
      %v666 = vsel %vm663, %v664, %v665
      %v667 = vrot.slane %v607, 2
      %v668 = vrot.slane %v292, 2
      %v669 = vsel %vm663, %v667, %v668
      %v670 = vrot.slane %v608, 2
      %v671 = vsel %vm663, %v665, %v670
      %v672 = vrot.slane %v609, 2
      %v673 = vsel %vm663, %v668, %v672
      %v676 = vsel %vm253, %v669, 0
      %v678 = vsel %vm253, %v673, 0
      %680 = vmatpush.msra.mxu0 %v641
      %681 = vmatpush.msra.mxu0 %v639
      %682 = vmatpush.msra.mxu0 %v637
      %683 = vmatpush.msra.mxu0 %v635
      %684 = vmatpush.msra.mxu0 %v633
      %685 = vmatpush.msra.mxu0 %v631
      %686 = vmatpush.msra.mxu0 %v629
      %687 = vmatpush.msra.mxu0 %v627
      %688 = vmatpush.msra.mxu0 %v625
      %689 = vmatpush.msra.mxu0 %v623
      %690 = vmatpush.msra.mxu0 %v621
      %691 = vmatpush.msra.mxu0 %v619
      %692 = vmatpush.msra.mxu0 %v617
      %693 = vmatpush.msra.mxu0 %v615
      %694 = vmatpush.msra.mxu0 %v613
      %695 = vmatpush.msra.mxu0 %v611
      %696 = vmatmul.f32.gmra.mxu0 %v666
      %v697 = vpop.f32.mrf.mxu0
      %v698 = vadd.f32 0.0, %v697
      %699 = vmatmul.f32.gmra.mxu0 %v671
      %v700 = vpop.f32.mrf.mxu0
      %v701 = vadd.f32 0.0, %v700
      %702 = vdwg.mxu0
      %703 = vmatpush.msra.mxu0 0.0
      %704 = vmatpush.msra.mxu0 0.0
      %705 = vmatpush.msra.mxu0 0.0
      %706 = vmatpush.msra.mxu0 0.0
      %707 = vmatpush.msra.mxu0 0.0
      %708 = vmatpush.msra.mxu0 0.0
      %709 = vmatpush.msra.mxu0 0.0
      %710 = vmatpush.msra.mxu0 0.0
      %711 = vmatpush.msra.mxu0 %v657
      %712 = vmatpush.msra.mxu0 %v655
      %713 = vmatpush.msra.mxu0 %v653
      %714 = vmatpush.msra.mxu0 %v651
      %715 = vmatpush.msra.mxu0 %v649
      %716 = vmatpush.msra.mxu0 %v647
      %717 = vmatpush.msra.mxu0 %v645
      %718 = vmatpush.msra.mxu0 %v643
      %719 = vmatmul.f32.gmra.mxu0 %v676
      %v720 = vpop.f32.mrf.mxu0
      %v721 = vadd.f32 %v698, %v720
      %722 = vmatmul.f32.gmra.mxu0 %v678
      %v723 = vpop.f32.mrf.mxu0
      %v724 = vadd.f32 %v701, %v723
      %725 = vdwg.mxu0
      %726 = vmatpush.msra.mxu0 %v642
      %727 = vmatpush.msra.mxu0 %v640
      %728 = vmatpush.msra.mxu0 %v638
      %729 = vmatpush.msra.mxu0 %v636
      %730 = vmatpush.msra.mxu0 %v634
      %731 = vmatpush.msra.mxu0 %v632
      %732 = vmatpush.msra.mxu0 %v630
      %733 = vmatpush.msra.mxu0 %v628
      %734 = vmatpush.msra.mxu0 %v626
      %735 = vmatpush.msra.mxu0 %v624
      %736 = vmatpush.msra.mxu0 %v622
      %737 = vmatpush.msra.mxu0 %v620
      %738 = vmatpush.msra.mxu0 %v618
      %739 = vmatpush.msra.mxu0 %v616
      %740 = vmatpush.msra.mxu0 %v614
      %741 = vmatpush.msra.mxu0 %v612
      %742 = vmatmul.f32.gmra.mxu0 %v666
      %v743 = vpop.f32.mrf.mxu0
      %v744 = vadd.f32 0.0, %v743
      %745 = vmatmul.f32.gmra.mxu0 %v671
      %v746 = vpop.f32.mrf.mxu0
      %v747 = vadd.f32 0.0, %v746
      %748 = vdwg.mxu0
      %749 = vmatpush.msra.mxu0 0.0
      %750 = vmatpush.msra.mxu0 0.0
      %751 = vmatpush.msra.mxu0 0.0
      %752 = vmatpush.msra.mxu0 0.0
      %753 = vmatpush.msra.mxu0 0.0
      %754 = vmatpush.msra.mxu0 0.0
      %755 = vmatpush.msra.mxu0 0.0
      %756 = vmatpush.msra.mxu0 0.0
      %757 = vmatpush.msra.mxu0 %v658
      %758 = vmatpush.msra.mxu0 %v656
      %759 = vmatpush.msra.mxu0 %v654
      %760 = vmatpush.msra.mxu0 %v652
      %761 = vmatpush.msra.mxu0 %v650
      %762 = vmatpush.msra.mxu0 %v648
      %763 = vmatpush.msra.mxu0 %v646
      %764 = vmatpush.msra.mxu0 %v644
      %765 = vmatmul.f32.gmra.mxu0 %v676
      %v766 = vpop.f32.mrf.mxu0
      %v767 = vadd.f32 %v744, %v766
      %768 = vmatmul.f32.gmra.mxu0 %v678
      %v769 = vpop.f32.mrf.mxu0
      %v770 = vadd.f32 %v747, %v769
      %771 = vdwg.mxu0
      %v772 = vadd.f32 %v555, %v721
      %v773 = vadd.f32 %v601, %v767
      %v774 = vadd.f32 %v558, %v724
      %v775 = vadd.f32 %v604, %v770
      %v776 = vld [vmem:[%s5] ss:$8 sm:$0x3]
      %s777 = scalar_lea.vmem %s5, 1
      %v778 = vld [vmem:[%s777] ss:$8 sm:$0x3]
      %s779 = scalar_lea.vmem %s5, 2
      %v780 = vld [vmem:[%s779] ss:$8 sm:$0x3]
      %v782 = vperm.slane %v776, 0
      %v783 = vperm.slane %v776, 1
      %v786 = vadd.f32 %v772, %v782
      %v787 = vadd.f32 %v773, %v783
      %v788 = vadd.f32 %v774, %v782
      %v789 = vadd.f32 %v775, %v783
      %vm790 = vcmp.ge.f32.partialorder %v786, 0.0
      %vm791 = vcmp.ge.f32.partialorder %v787, 0.0
      %vm792 = vcmp.ge.f32.partialorder %v788, 0.0
      %vm793 = vcmp.ge.f32.partialorder %v789, 0.0
      %v794 = vmul.f32 %v786, 0.01
      %v795 = vmul.f32 %v787, 0.01
      %v796 = vmul.f32 %v788, 0.01
      %v797 = vmul.f32 %v789, 0.01
      %v798 = vsel %vm790, %v786, %v794
      %v799 = vsel %vm791, %v787, %v795
      %v800 = vsel %vm792, %v788, %v796
      %v801 = vsel %vm793, %v789, %v797
      %v803 = vperm.slane %v778, 0
      %v804 = vperm.slane %v778, 1
      %v807 = vmul.f32 %v798, %v803
      %v808 = vmul.f32 %v799, %v804
      %v809 = vmul.f32 %v800, %v803
      %v810 = vmul.f32 %v801, %v804
      %v812 = vperm.slane %v780, 0
      %v813 = vperm.slane %v780, 1
      %v816 = vadd.f32 %v807, %v812
      %v817 = vadd.f32 %v808, %v813
      %v818 = vadd.f32 %v809, %v812
      %v819 = vadd.f32 %v810, %v813
      %820 = vst [vmem:[#allocation3] sm:$0xff] 0.0
      %821 = vst [vmem:[#allocation3 + $0x8] sm:$0xff] 0.0
      %822 = vst [vmem:[#allocation3 + $0x10] sm:$0xff] 0.0
      %823 = vst [vmem:[#allocation3 + $0x18] sm:$0xff] 0.0
      %824 = vst [vmem:[#allocation3 + $0x20] sm:$0xf] 0.0
      %825 = vst [vmem:[#allocation3 + $0x28] sm:$0xf] 0.0
      %vm830 = vcmask 1041408
      %v831 = vrot.slane %v816, 6
      %v832 = vrot.slane %v817, 6
      %v833 = vrot.slane %v818, 6
      %v834 = vsel %vm830, %v831, %v833
      %v835 = vrot.slane %v819, 6
      %v836 = vsel %vm830, %v832, %v835
      %843 = vst [vmem:[#allocation3] sm:$0xfc] %v831
      %844 = vst [vmem:[#allocation3 + $0x8] sm:$0xfc] %v832
      %845 = vst [vmem:[#allocation3 + $0x10] sm:$0xff] %v834
      %846 = vst [vmem:[#allocation3 + $0x18] sm:$0xff] %v836
      %847 = vst [vmem:[#allocation3 + $0x20] sm:$0x3] %v833
      %848 = vst [vmem:[#allocation3 + $0x28] sm:$0x3] %v835
      %v849 = vld [vmem:[#allocation3] sm:$0xff]
      %v850 = vld [vmem:[#allocation3 + $0x8] sm:$0xff]
      %v851 = vld [vmem:[#allocation3 + $0x10] sm:$0xff]
      %v852 = vld [vmem:[#allocation3 + $0x18] sm:$0xff]
      %v853 = vld [vmem:[%s2] sm:$0xff]
      %v854 = vld [vmem:[%s2 + $0x8] sm:$0xff]
      %v855 = vld [vmem:[%s2 + $0x10] sm:$0xff]
      %v856 = vld [vmem:[%s2 + $0x18] sm:$0xff]
      %v857 = vld [vmem:[%s2 + $0x20] sm:$0xff]
      %v858 = vld [vmem:[%s2 + $0x28] sm:$0xff]
      %v859 = vld [vmem:[%s2 + $0x30] sm:$0xff]
      %v860 = vld [vmem:[%s2 + $0x38] sm:$0xff]
      %v861 = vld [vmem:[%s2 + $0x40] sm:$0xff]
      %v862 = vld [vmem:[%s2 + $0x48] sm:$0xff]
      %v863 = vld [vmem:[%s2 + $0x50] sm:$0xff]
      %v864 = vld [vmem:[%s2 + $0x58] sm:$0xff]
      %v865 = vld [vmem:[%s2 + $0x60] sm:$0xff]
      %v866 = vld [vmem:[%s2 + $0x68] sm:$0xff]
      %v867 = vld [vmem:[%s2 + $0x70] sm:$0xff]
      %v868 = vld [vmem:[%s2 + $0x78] sm:$0xff]
      %v869 = vld [vmem:[%s2 + $0x80] sm:$0xff]
      %v870 = vld [vmem:[%s2 + $0x88] sm:$0xff]
      %v871 = vld [vmem:[%s2 + $0x90] sm:$0xff]
      %v872 = vld [vmem:[%s2 + $0x98] sm:$0xff]
      %v873 = vld [vmem:[%s2 + $0xa0] sm:$0xff]
      %v874 = vld [vmem:[%s2 + $0xa8] sm:$0xff]
      %v875 = vld [vmem:[%s2 + $0xb0] sm:$0xff]
      %v876 = vld [vmem:[%s2 + $0xb8] sm:$0xff]
      %v877 = vld [vmem:[%s2 + $0xc0] sm:$0xff]
      %v878 = vld [vmem:[%s2 + $0xc8] sm:$0xff]
      %v879 = vld [vmem:[%s2 + $0xd0] sm:$0xff]
      %v880 = vld [vmem:[%s2 + $0xd8] sm:$0xff]
      %v881 = vld [vmem:[%s2 + $0xe0] sm:$0xff]
      %v882 = vld [vmem:[%s2 + $0xe8] sm:$0xff]
      %v883 = vld [vmem:[%s2 + $0xf0] sm:$0xff]
      %v884 = vld [vmem:[%s2 + $0xf8] sm:$0xff]
      %v885 = vld [vmem:[%s2 + $0x100] sm:$0xff]
      %v886 = vld [vmem:[%s2 + $0x108] sm:$0xff]
      %v887 = vld [vmem:[%s2 + $0x110] sm:$0xff]
      %v888 = vld [vmem:[%s2 + $0x118] sm:$0xff]
      %v889 = vld [vmem:[%s2 + $0x120] sm:$0xff]
      %v890 = vld [vmem:[%s2 + $0x128] sm:$0xff]
      %v891 = vld [vmem:[%s2 + $0x130] sm:$0xff]
      %v892 = vld [vmem:[%s2 + $0x138] sm:$0xff]
      %v893 = vld [vmem:[%s2 + $0x140] sm:$0xff]
      %v894 = vld [vmem:[%s2 + $0x148] sm:$0xff]
      %v895 = vld [vmem:[%s2 + $0x150] sm:$0xff]
      %v896 = vld [vmem:[%s2 + $0x158] sm:$0xff]
      %v897 = vld [vmem:[%s2 + $0x160] sm:$0xff]
      %v898 = vld [vmem:[%s2 + $0x168] sm:$0xff]
      %v899 = vld [vmem:[%s2 + $0x170] sm:$0xff]
      %v900 = vld [vmem:[%s2 + $0x178] sm:$0xff]
      %v901 = vld [vmem:[%s2 + $0x180] sm:$0xff]
      %v902 = vld [vmem:[%s2 + $0x188] sm:$0xff]
      %v903 = vld [vmem:[%s2 + $0x190] sm:$0xff]
      %v904 = vld [vmem:[%s2 + $0x198] sm:$0xff]
      %v905 = vld [vmem:[%s2 + $0x1a0] sm:$0xff]
      %v906 = vld [vmem:[%s2 + $0x1a8] sm:$0xff]
      %v907 = vld [vmem:[%s2 + $0x1b0] sm:$0xff]
      %v908 = vld [vmem:[%s2 + $0x1b8] sm:$0xff]
      %v909 = vld [vmem:[%s2 + $0x1c0] sm:$0xff]
      %v910 = vld [vmem:[%s2 + $0x1c8] sm:$0xff]
      %v911 = vld [vmem:[%s2 + $0x1d0] sm:$0xff]
      %v912 = vld [vmem:[%s2 + $0x1d8] sm:$0xff]
      %v913 = vld [vmem:[%s2 + $0x1e0] sm:$0xff]
      %v914 = vld [vmem:[%s2 + $0x1e8] sm:$0xff]
      %v915 = vld [vmem:[%s2 + $0x1f0] sm:$0xff]
      %v916 = vld [vmem:[%s2 + $0x1f8] sm:$0xff]
      %v917 = vld [vmem:[#allocation3] sm:$0xfc]
      %v918 = vld [vmem:[#allocation3 + $0x8] sm:$0xfc]
      %v919 = vld [vmem:[#allocation3 + $0x20] sm:$0x3]
      %v920 = vld [vmem:[#allocation3 + $0x28] sm:$0x3]
      %s921 = scalar_lea.vmem %s2, 512
      %v922 = vld [vmem:[%s921] sm:$0xff]
      %v923 = vld [vmem:[%s921 + $0x8] sm:$0xff]
      %v924 = vld [vmem:[%s921 + $0x10] sm:$0xff]
      %v925 = vld [vmem:[%s921 + $0x18] sm:$0xff]
      %v926 = vld [vmem:[%s921 + $0x20] sm:$0xff]
      %v927 = vld [vmem:[%s921 + $0x28] sm:$0xff]
      %v928 = vld [vmem:[%s921 + $0x30] sm:$0xff]
      %v929 = vld [vmem:[%s921 + $0x38] sm:$0xff]
      %v930 = vld [vmem:[%s921 + $0x40] sm:$0xff]
      %v931 = vld [vmem:[%s921 + $0x48] sm:$0xff]
      %v932 = vld [vmem:[%s921 + $0x50] sm:$0xff]
      %v933 = vld [vmem:[%s921 + $0x58] sm:$0xff]
      %v934 = vld [vmem:[%s921 + $0x60] sm:$0xff]
      %v935 = vld [vmem:[%s921 + $0x68] sm:$0xff]
      %v936 = vld [vmem:[%s921 + $0x70] sm:$0xff]
      %v937 = vld [vmem:[%s921 + $0x78] sm:$0xff]
      %v938 = vld [vmem:[%s921 + $0x80] sm:$0xff]
      %v939 = vld [vmem:[%s921 + $0x88] sm:$0xff]
      %v940 = vld [vmem:[%s921 + $0x90] sm:$0xff]
      %v941 = vld [vmem:[%s921 + $0x98] sm:$0xff]
      %v942 = vld [vmem:[%s921 + $0xa0] sm:$0xff]
      %v943 = vld [vmem:[%s921 + $0xa8] sm:$0xff]
      %v944 = vld [vmem:[%s921 + $0xb0] sm:$0xff]
      %v945 = vld [vmem:[%s921 + $0xb8] sm:$0xff]
      %v946 = vld [vmem:[%s921 + $0xc0] sm:$0xff]
      %v947 = vld [vmem:[%s921 + $0xc8] sm:$0xff]
      %v948 = vld [vmem:[%s921 + $0xd0] sm:$0xff]
      %v949 = vld [vmem:[%s921 + $0xd8] sm:$0xff]
      %v950 = vld [vmem:[%s921 + $0xe0] sm:$0xff]
      %v951 = vld [vmem:[%s921 + $0xe8] sm:$0xff]
      %v952 = vld [vmem:[%s921 + $0xf0] sm:$0xff]
      %v953 = vld [vmem:[%s921 + $0xf8] sm:$0xff]
      %v954 = vld [vmem:[%s921 + $0x100] sm:$0xff]
      %v955 = vld [vmem:[%s921 + $0x108] sm:$0xff]
      %v956 = vld [vmem:[%s921 + $0x110] sm:$0xff]
      %v957 = vld [vmem:[%s921 + $0x118] sm:$0xff]
      %v958 = vld [vmem:[%s921 + $0x120] sm:$0xff]
      %v959 = vld [vmem:[%s921 + $0x128] sm:$0xff]
      %v960 = vld [vmem:[%s921 + $0x130] sm:$0xff]
      %v961 = vld [vmem:[%s921 + $0x138] sm:$0xff]
      %v962 = vld [vmem:[%s921 + $0x140] sm:$0xff]
      %v963 = vld [vmem:[%s921 + $0x148] sm:$0xff]
      %v964 = vld [vmem:[%s921 + $0x150] sm:$0xff]
      %v965 = vld [vmem:[%s921 + $0x158] sm:$0xff]
      %v966 = vld [vmem:[%s921 + $0x160] sm:$0xff]
      %v967 = vld [vmem:[%s921 + $0x168] sm:$0xff]
      %v968 = vld [vmem:[%s921 + $0x170] sm:$0xff]
      %v969 = vld [vmem:[%s921 + $0x178] sm:$0xff]
      %v970 = vld [vmem:[%s921 + $0x180] sm:$0xff]
      %v971 = vld [vmem:[%s921 + $0x188] sm:$0xff]
      %v972 = vld [vmem:[%s921 + $0x190] sm:$0xff]
      %v973 = vld [vmem:[%s921 + $0x198] sm:$0xff]
      %v974 = vld [vmem:[%s921 + $0x1a0] sm:$0xff]
      %v975 = vld [vmem:[%s921 + $0x1a8] sm:$0xff]
      %v976 = vld [vmem:[%s921 + $0x1b0] sm:$0xff]
      %v977 = vld [vmem:[%s921 + $0x1b8] sm:$0xff]
      %v978 = vld [vmem:[%s921 + $0x1c0] sm:$0xff]
      %v979 = vld [vmem:[%s921 + $0x1c8] sm:$0xff]
      %v980 = vld [vmem:[%s921 + $0x1d0] sm:$0xff]
      %v981 = vld [vmem:[%s921 + $0x1d8] sm:$0xff]
      %v982 = vld [vmem:[%s921 + $0x1e0] sm:$0xff]
      %v983 = vld [vmem:[%s921 + $0x1e8] sm:$0xff]
      %v984 = vld [vmem:[%s921 + $0x1f0] sm:$0xff]
      %v985 = vld [vmem:[%s921 + $0x1f8] sm:$0xff]
      %v992 = vrot.slane %v917, 2
      %v993 = vrot.slane %v851, 2
      %v994 = vsel %vm663, %v992, %v993
      %v995 = vrot.slane %v918, 2
      %v996 = vrot.slane %v852, 2
      %v997 = vsel %vm663, %v995, %v996
      %v998 = vrot.slane %v919, 2
      %v999 = vsel %vm663, %v993, %v998
      %v1000 = vrot.slane %v920, 2
      %v1001 = vsel %vm663, %v996, %v1000
      %1006 = vmatpush.msra.mxu0 %v952
      %1007 = vmatpush.msra.mxu0 %v950
      %1008 = vmatpush.msra.mxu0 %v948
      %1009 = vmatpush.msra.mxu0 %v946
      %1010 = vmatpush.msra.mxu0 %v944
      %1011 = vmatpush.msra.mxu0 %v942
      %1012 = vmatpush.msra.mxu0 %v940
      %1013 = vmatpush.msra.mxu0 %v938
      %1014 = vmatpush.msra.mxu0 %v936
      %1015 = vmatpush.msra.mxu0 %v934
      %1016 = vmatpush.msra.mxu0 %v932
      %1017 = vmatpush.msra.mxu0 %v930
      %1018 = vmatpush.msra.mxu0 %v928
      %1019 = vmatpush.msra.mxu0 %v926
      %1020 = vmatpush.msra.mxu0 %v924
      %1021 = vmatpush.msra.mxu0 %v922
      %1022 = vmatmul.f32.gmra.mxu0 %v994
      %v1023 = vpop.f32.mrf.mxu0
      %v1024 = vadd.f32 0.0, %v1023
      %1025 = vmatmul.f32.gmra.mxu0 %v999
      %v1026 = vpop.f32.mrf.mxu0
      %v1027 = vadd.f32 0.0, %v1026
      %1028 = vdwg.mxu0
      %1029 = vmatpush.msra.mxu0 %v984
      %1030 = vmatpush.msra.mxu0 %v982
      %1031 = vmatpush.msra.mxu0 %v980
      %1032 = vmatpush.msra.mxu0 %v978
      %1033 = vmatpush.msra.mxu0 %v976
      %1034 = vmatpush.msra.mxu0 %v974
      %1035 = vmatpush.msra.mxu0 %v972
      %1036 = vmatpush.msra.mxu0 %v970
      %1037 = vmatpush.msra.mxu0 %v968
      %1038 = vmatpush.msra.mxu0 %v966
      %1039 = vmatpush.msra.mxu0 %v964
      %1040 = vmatpush.msra.mxu0 %v962
      %1041 = vmatpush.msra.mxu0 %v960
      %1042 = vmatpush.msra.mxu0 %v958
      %1043 = vmatpush.msra.mxu0 %v956
      %1044 = vmatpush.msra.mxu0 %v954
      %1045 = vmatmul.f32.gmra.mxu0 %v997
      %v1046 = vpop.f32.mrf.mxu0
      %v1047 = vadd.f32 %v1024, %v1046
      %1048 = vmatmul.f32.gmra.mxu0 %v1001
      %v1049 = vpop.f32.mrf.mxu0
      %v1050 = vadd.f32 %v1027, %v1049
      %1051 = vdwg.mxu0
      %1052 = vmatpush.msra.mxu0 %v953
      %1053 = vmatpush.msra.mxu0 %v951
      %1054 = vmatpush.msra.mxu0 %v949
      %1055 = vmatpush.msra.mxu0 %v947
      %1056 = vmatpush.msra.mxu0 %v945
      %1057 = vmatpush.msra.mxu0 %v943
      %1058 = vmatpush.msra.mxu0 %v941
      %1059 = vmatpush.msra.mxu0 %v939
      %1060 = vmatpush.msra.mxu0 %v937
      %1061 = vmatpush.msra.mxu0 %v935
      %1062 = vmatpush.msra.mxu0 %v933
      %1063 = vmatpush.msra.mxu0 %v931
      %1064 = vmatpush.msra.mxu0 %v929
      %1065 = vmatpush.msra.mxu0 %v927
      %1066 = vmatpush.msra.mxu0 %v925
      %1067 = vmatpush.msra.mxu0 %v923
      %1068 = vmatmul.f32.gmra.mxu0 %v994
      %v1069 = vpop.f32.mrf.mxu0
      %v1070 = vadd.f32 0.0, %v1069
      %1071 = vmatmul.f32.gmra.mxu0 %v999
      %v1072 = vpop.f32.mrf.mxu0
      %v1073 = vadd.f32 0.0, %v1072
      %1074 = vdwg.mxu0
      %1075 = vmatpush.msra.mxu0 %v985
      %1076 = vmatpush.msra.mxu0 %v983
      %1077 = vmatpush.msra.mxu0 %v981
      %1078 = vmatpush.msra.mxu0 %v979
      %1079 = vmatpush.msra.mxu0 %v977
      %1080 = vmatpush.msra.mxu0 %v975
      %1081 = vmatpush.msra.mxu0 %v973
      %1082 = vmatpush.msra.mxu0 %v971
      %1083 = vmatpush.msra.mxu0 %v969
      %1084 = vmatpush.msra.mxu0 %v967
      %1085 = vmatpush.msra.mxu0 %v965
      %1086 = vmatpush.msra.mxu0 %v963
      %1087 = vmatpush.msra.mxu0 %v961
      %1088 = vmatpush.msra.mxu0 %v959
      %1089 = vmatpush.msra.mxu0 %v957
      %1090 = vmatpush.msra.mxu0 %v955
      %1091 = vmatmul.f32.gmra.mxu0 %v997
      %v1092 = vpop.f32.mrf.mxu0
      %v1093 = vadd.f32 %v1070, %v1092
      %1094 = vmatmul.f32.gmra.mxu0 %v1001
      %v1095 = vpop.f32.mrf.mxu0
      %v1096 = vadd.f32 %v1073, %v1095
      %1097 = vdwg.mxu0
      %1098 = vmatpush.msra.mxu0 %v883
      %1099 = vmatpush.msra.mxu0 %v881
      %1100 = vmatpush.msra.mxu0 %v879
      %1101 = vmatpush.msra.mxu0 %v877
      %1102 = vmatpush.msra.mxu0 %v875
      %1103 = vmatpush.msra.mxu0 %v873
      %1104 = vmatpush.msra.mxu0 %v871
      %1105 = vmatpush.msra.mxu0 %v869
      %1106 = vmatpush.msra.mxu0 %v867
      %1107 = vmatpush.msra.mxu0 %v865
      %1108 = vmatpush.msra.mxu0 %v863
      %1109 = vmatpush.msra.mxu0 %v861
      %1110 = vmatpush.msra.mxu0 %v859
      %1111 = vmatpush.msra.mxu0 %v857
      %1112 = vmatpush.msra.mxu0 %v855
      %1113 = vmatpush.msra.mxu0 %v853
      %1114 = vmatmul.f32.gmra.mxu0 %v849
      %v1115 = vpop.f32.mrf.mxu0
      %v1116 = vadd.f32 %v1047, %v1115
      %1117 = vmatmul.f32.gmra.mxu0 %v851
      %v1118 = vpop.f32.mrf.mxu0
      %v1119 = vadd.f32 %v1050, %v1118
      %1120 = vdwg.mxu0
      %1121 = vmatpush.msra.mxu0 %v915
      %1122 = vmatpush.msra.mxu0 %v913
      %1123 = vmatpush.msra.mxu0 %v911
      %1124 = vmatpush.msra.mxu0 %v909
      %1125 = vmatpush.msra.mxu0 %v907
      %1126 = vmatpush.msra.mxu0 %v905
      %1127 = vmatpush.msra.mxu0 %v903
      %1128 = vmatpush.msra.mxu0 %v901
      %1129 = vmatpush.msra.mxu0 %v899
      %1130 = vmatpush.msra.mxu0 %v897
      %1131 = vmatpush.msra.mxu0 %v895
      %1132 = vmatpush.msra.mxu0 %v893
      %1133 = vmatpush.msra.mxu0 %v891
      %1134 = vmatpush.msra.mxu0 %v889
      %1135 = vmatpush.msra.mxu0 %v887
      %1136 = vmatpush.msra.mxu0 %v885
      %1137 = vmatmul.f32.gmra.mxu0 %v850
      %v1138 = vpop.f32.mrf.mxu0
      %v1139 = vadd.f32 %v1116, %v1138
      %1140 = vmatmul.f32.gmra.mxu0 %v852
      %v1141 = vpop.f32.mrf.mxu0
      %v1142 = vadd.f32 %v1119, %v1141
      %1143 = vdwg.mxu0
      %1144 = vmatpush.msra.mxu0 %v884
      %1145 = vmatpush.msra.mxu0 %v882
      %1146 = vmatpush.msra.mxu0 %v880
      %1147 = vmatpush.msra.mxu0 %v878
      %1148 = vmatpush.msra.mxu0 %v876
      %1149 = vmatpush.msra.mxu0 %v874
      %1150 = vmatpush.msra.mxu0 %v872
      %1151 = vmatpush.msra.mxu0 %v870
      %1152 = vmatpush.msra.mxu0 %v868
      %1153 = vmatpush.msra.mxu0 %v866
      %1154 = vmatpush.msra.mxu0 %v864
      %1155 = vmatpush.msra.mxu0 %v862
      %1156 = vmatpush.msra.mxu0 %v860
      %1157 = vmatpush.msra.mxu0 %v858
      %1158 = vmatpush.msra.mxu0 %v856
      %1159 = vmatpush.msra.mxu0 %v854
      %1160 = vmatmul.f32.gmra.mxu0 %v849
      %v1161 = vpop.f32.mrf.mxu0
      %v1162 = vadd.f32 %v1093, %v1161
      %1163 = vmatmul.f32.gmra.mxu0 %v851
      %v1164 = vpop.f32.mrf.mxu0
      %v1165 = vadd.f32 %v1096, %v1164
      %1166 = vdwg.mxu0
      %1167 = vmatpush.msra.mxu0 %v916
      %1168 = vmatpush.msra.mxu0 %v914
      %1169 = vmatpush.msra.mxu0 %v912
      %1170 = vmatpush.msra.mxu0 %v910
      %1171 = vmatpush.msra.mxu0 %v908
      %1172 = vmatpush.msra.mxu0 %v906
      %1173 = vmatpush.msra.mxu0 %v904
      %1174 = vmatpush.msra.mxu0 %v902
      %1175 = vmatpush.msra.mxu0 %v900
      %1176 = vmatpush.msra.mxu0 %v898
      %1177 = vmatpush.msra.mxu0 %v896
      %1178 = vmatpush.msra.mxu0 %v894
      %1179 = vmatpush.msra.mxu0 %v892
      %1180 = vmatpush.msra.mxu0 %v890
      %1181 = vmatpush.msra.mxu0 %v888
      %1182 = vmatpush.msra.mxu0 %v886
      %1183 = vmatmul.f32.gmra.mxu0 %v850
      %v1184 = vpop.f32.mrf.mxu0
      %v1185 = vadd.f32 %v1162, %v1184
      %1186 = vmatmul.f32.gmra.mxu0 %v852
      %v1187 = vpop.f32.mrf.mxu0
      %v1188 = vadd.f32 %v1165, %v1187
      %1189 = vdwg.mxu0
      %v1190 = vld [vmem:[#allocation3] sm:$0xf0]
      %v1191 = vld [vmem:[#allocation3 + $0x8] sm:$0xf0]
      %v1192 = vld [vmem:[#allocation3 + $0x20] sm:$0xf]
      %v1193 = vld [vmem:[#allocation3 + $0x28] sm:$0xf]
      %s1194 = scalar_lea.vmem %s2, 1024
      %v1195 = vld [vmem:[%s1194] sm:$0xff]
      %v1196 = vld [vmem:[%s1194 + $0x8] sm:$0xff]
      %v1197 = vld [vmem:[%s1194 + $0x10] sm:$0xff]
      %v1198 = vld [vmem:[%s1194 + $0x18] sm:$0xff]
      %v1199 = vld [vmem:[%s1194 + $0x20] sm:$0xff]
      %v1200 = vld [vmem:[%s1194 + $0x28] sm:$0xff]
      %v1201 = vld [vmem:[%s1194 + $0x30] sm:$0xff]
      %v1202 = vld [vmem:[%s1194 + $0x38] sm:$0xff]
      %v1203 = vld [vmem:[%s1194 + $0x40] sm:$0xff]
      %v1204 = vld [vmem:[%s1194 + $0x48] sm:$0xff]
      %v1205 = vld [vmem:[%s1194 + $0x50] sm:$0xff]
      %v1206 = vld [vmem:[%s1194 + $0x58] sm:$0xff]
      %v1207 = vld [vmem:[%s1194 + $0x60] sm:$0xff]
      %v1208 = vld [vmem:[%s1194 + $0x68] sm:$0xff]
      %v1209 = vld [vmem:[%s1194 + $0x70] sm:$0xff]
      %v1210 = vld [vmem:[%s1194 + $0x78] sm:$0xff]
      %v1211 = vld [vmem:[%s1194 + $0x80] sm:$0xff]
      %v1212 = vld [vmem:[%s1194 + $0x88] sm:$0xff]
      %v1213 = vld [vmem:[%s1194 + $0x90] sm:$0xff]
      %v1214 = vld [vmem:[%s1194 + $0x98] sm:$0xff]
      %v1215 = vld [vmem:[%s1194 + $0xa0] sm:$0xff]
      %v1216 = vld [vmem:[%s1194 + $0xa8] sm:$0xff]
      %v1217 = vld [vmem:[%s1194 + $0xb0] sm:$0xff]
      %v1218 = vld [vmem:[%s1194 + $0xb8] sm:$0xff]
      %v1219 = vld [vmem:[%s1194 + $0xc0] sm:$0xff]
      %v1220 = vld [vmem:[%s1194 + $0xc8] sm:$0xff]
      %v1221 = vld [vmem:[%s1194 + $0xd0] sm:$0xff]
      %v1222 = vld [vmem:[%s1194 + $0xd8] sm:$0xff]
      %v1223 = vld [vmem:[%s1194 + $0xe0] sm:$0xff]
      %v1224 = vld [vmem:[%s1194 + $0xe8] sm:$0xff]
      %v1225 = vld [vmem:[%s1194 + $0xf0] sm:$0xff]
      %v1226 = vld [vmem:[%s1194 + $0xf8] sm:$0xff]
      %v1227 = vld [vmem:[%s1194 + $0x100] sm:$0xff]
      %v1228 = vld [vmem:[%s1194 + $0x108] sm:$0xff]
      %v1229 = vld [vmem:[%s1194 + $0x110] sm:$0xff]
      %v1230 = vld [vmem:[%s1194 + $0x118] sm:$0xff]
      %v1231 = vld [vmem:[%s1194 + $0x120] sm:$0xff]
      %v1232 = vld [vmem:[%s1194 + $0x128] sm:$0xff]
      %v1233 = vld [vmem:[%s1194 + $0x130] sm:$0xff]
      %v1234 = vld [vmem:[%s1194 + $0x138] sm:$0xff]
      %v1235 = vld [vmem:[%s1194 + $0x140] sm:$0xff]
      %v1236 = vld [vmem:[%s1194 + $0x148] sm:$0xff]
      %v1237 = vld [vmem:[%s1194 + $0x150] sm:$0xff]
      %v1238 = vld [vmem:[%s1194 + $0x158] sm:$0xff]
      %v1239 = vld [vmem:[%s1194 + $0x160] sm:$0xff]
      %v1240 = vld [vmem:[%s1194 + $0x168] sm:$0xff]
      %v1241 = vld [vmem:[%s1194 + $0x170] sm:$0xff]
      %v1242 = vld [vmem:[%s1194 + $0x178] sm:$0xff]
      %v1243 = vld [vmem:[%s1194 + $0x180] sm:$0xff]
      %v1244 = vld [vmem:[%s1194 + $0x188] sm:$0xff]
      %v1245 = vld [vmem:[%s1194 + $0x190] sm:$0xff]
      %v1246 = vld [vmem:[%s1194 + $0x198] sm:$0xff]
      %v1247 = vld [vmem:[%s1194 + $0x1a0] sm:$0xff]
      %v1248 = vld [vmem:[%s1194 + $0x1a8] sm:$0xff]
      %v1249 = vld [vmem:[%s1194 + $0x1b0] sm:$0xff]
      %v1250 = vld [vmem:[%s1194 + $0x1b8] sm:$0xff]
      %v1251 = vld [vmem:[%s1194 + $0x1c0] sm:$0xff]
      %v1252 = vld [vmem:[%s1194 + $0x1c8] sm:$0xff]
      %v1253 = vld [vmem:[%s1194 + $0x1d0] sm:$0xff]
      %v1254 = vld [vmem:[%s1194 + $0x1d8] sm:$0xff]
      %v1255 = vld [vmem:[%s1194 + $0x1e0] sm:$0xff]
      %v1256 = vld [vmem:[%s1194 + $0x1e8] sm:$0xff]
      %v1257 = vld [vmem:[%s1194 + $0x1f0] sm:$0xff]
      %v1258 = vld [vmem:[%s1194 + $0x1f8] sm:$0xff]
      %vm1263 = vcmask 1043456
      %v1264 = vrot.slane %v1190, 4
      %v1265 = vrot.slane %v851, 4
      %v1266 = vsel %vm1263, %v1264, %v1265
      %v1267 = vrot.slane %v1191, 4
      %v1268 = vrot.slane %v852, 4
      %v1269 = vsel %vm1263, %v1267, %v1268
      %v1270 = vrot.slane %v1192, 4
      %v1271 = vsel %vm1263, %v1265, %v1270
      %v1272 = vrot.slane %v1193, 4
      %v1273 = vsel %vm1263, %v1268, %v1272
      %1278 = vmatpush.msra.mxu0 %v1225
      %1279 = vmatpush.msra.mxu0 %v1223
      %1280 = vmatpush.msra.mxu0 %v1221
      %1281 = vmatpush.msra.mxu0 %v1219
      %1282 = vmatpush.msra.mxu0 %v1217
      %1283 = vmatpush.msra.mxu0 %v1215
      %1284 = vmatpush.msra.mxu0 %v1213
      %1285 = vmatpush.msra.mxu0 %v1211
      %1286 = vmatpush.msra.mxu0 %v1209
      %1287 = vmatpush.msra.mxu0 %v1207
      %1288 = vmatpush.msra.mxu0 %v1205
      %1289 = vmatpush.msra.mxu0 %v1203
      %1290 = vmatpush.msra.mxu0 %v1201
      %1291 = vmatpush.msra.mxu0 %v1199
      %1292 = vmatpush.msra.mxu0 %v1197
      %1293 = vmatpush.msra.mxu0 %v1195
      %1294 = vmatmul.f32.gmra.mxu0 %v1266
      %v1295 = vpop.f32.mrf.mxu0
      %v1296 = vadd.f32 0.0, %v1295
      %1297 = vmatmul.f32.gmra.mxu0 %v1271
      %v1298 = vpop.f32.mrf.mxu0
      %v1299 = vadd.f32 0.0, %v1298
      %1300 = vdwg.mxu0
      %1301 = vmatpush.msra.mxu0 %v1257
      %1302 = vmatpush.msra.mxu0 %v1255
      %1303 = vmatpush.msra.mxu0 %v1253
      %1304 = vmatpush.msra.mxu0 %v1251
      %1305 = vmatpush.msra.mxu0 %v1249
      %1306 = vmatpush.msra.mxu0 %v1247
      %1307 = vmatpush.msra.mxu0 %v1245
      %1308 = vmatpush.msra.mxu0 %v1243
      %1309 = vmatpush.msra.mxu0 %v1241
      %1310 = vmatpush.msra.mxu0 %v1239
      %1311 = vmatpush.msra.mxu0 %v1237
      %1312 = vmatpush.msra.mxu0 %v1235
      %1313 = vmatpush.msra.mxu0 %v1233
      %1314 = vmatpush.msra.mxu0 %v1231
      %1315 = vmatpush.msra.mxu0 %v1229
      %1316 = vmatpush.msra.mxu0 %v1227
      %1317 = vmatmul.f32.gmra.mxu0 %v1269
      %v1318 = vpop.f32.mrf.mxu0
      %v1319 = vadd.f32 %v1296, %v1318
      %1320 = vmatmul.f32.gmra.mxu0 %v1273
      %v1321 = vpop.f32.mrf.mxu0
      %v1322 = vadd.f32 %v1299, %v1321
      %1323 = vdwg.mxu0
      %1324 = vmatpush.msra.mxu0 %v1226
      %1325 = vmatpush.msra.mxu0 %v1224
      %1326 = vmatpush.msra.mxu0 %v1222
      %1327 = vmatpush.msra.mxu0 %v1220
      %1328 = vmatpush.msra.mxu0 %v1218
      %1329 = vmatpush.msra.mxu0 %v1216
      %1330 = vmatpush.msra.mxu0 %v1214
      %1331 = vmatpush.msra.mxu0 %v1212
      %1332 = vmatpush.msra.mxu0 %v1210
      %1333 = vmatpush.msra.mxu0 %v1208
      %1334 = vmatpush.msra.mxu0 %v1206
      %1335 = vmatpush.msra.mxu0 %v1204
      %1336 = vmatpush.msra.mxu0 %v1202
      %1337 = vmatpush.msra.mxu0 %v1200
      %1338 = vmatpush.msra.mxu0 %v1198
      %1339 = vmatpush.msra.mxu0 %v1196
      %1340 = vmatmul.f32.gmra.mxu0 %v1266
      %v1341 = vpop.f32.mrf.mxu0
      %v1342 = vadd.f32 0.0, %v1341
      %1343 = vmatmul.f32.gmra.mxu0 %v1271
      %v1344 = vpop.f32.mrf.mxu0
      %v1345 = vadd.f32 0.0, %v1344
      %1346 = vdwg.mxu0
      %1347 = vmatpush.msra.mxu0 %v1258
      %1348 = vmatpush.msra.mxu0 %v1256
      %1349 = vmatpush.msra.mxu0 %v1254
      %1350 = vmatpush.msra.mxu0 %v1252
      %1351 = vmatpush.msra.mxu0 %v1250
      %1352 = vmatpush.msra.mxu0 %v1248
      %1353 = vmatpush.msra.mxu0 %v1246
      %1354 = vmatpush.msra.mxu0 %v1244
      %1355 = vmatpush.msra.mxu0 %v1242
      %1356 = vmatpush.msra.mxu0 %v1240
      %1357 = vmatpush.msra.mxu0 %v1238
      %1358 = vmatpush.msra.mxu0 %v1236
      %1359 = vmatpush.msra.mxu0 %v1234
      %1360 = vmatpush.msra.mxu0 %v1232
      %1361 = vmatpush.msra.mxu0 %v1230
      %1362 = vmatpush.msra.mxu0 %v1228
      %1363 = vmatmul.f32.gmra.mxu0 %v1269
      %v1364 = vpop.f32.mrf.mxu0
      %v1365 = vadd.f32 %v1342, %v1364
      %1366 = vmatmul.f32.gmra.mxu0 %v1273
      %v1367 = vpop.f32.mrf.mxu0
      %v1368 = vadd.f32 %v1345, %v1367
      %1369 = vdwg.mxu0
      %v1370 = vadd.f32 %v1139, %v1319
      %v1371 = vadd.f32 %v1185, %v1365
      %v1372 = vadd.f32 %v1142, %v1322
      %v1373 = vadd.f32 %v1188, %v1368
      %s1374 = scalar_lea.vmem %s5, 3
      %v1375 = vld [vmem:[%s1374] ss:$8 sm:$0x3]
      %s1376 = scalar_lea.vmem %s5, 4
      %v1377 = vld [vmem:[%s1376] ss:$8 sm:$0x3]
      %s1378 = scalar_lea.vmem %s5, 5
      %v1379 = vld [vmem:[%s1378] ss:$8 sm:$0x3]
      %v1381 = vperm.slane %v1375, 0
      %v1382 = vperm.slane %v1375, 1
      %v1385 = vadd.f32 %v1370, %v1381
      %v1386 = vadd.f32 %v1371, %v1382
      %v1387 = vadd.f32 %v1372, %v1381
      %v1388 = vadd.f32 %v1373, %v1382
      %vm1389 = vcmp.ge.f32.partialorder %v1385, 0.0
      %vm1390 = vcmp.ge.f32.partialorder %v1386, 0.0
      %vm1391 = vcmp.ge.f32.partialorder %v1387, 0.0
      %vm1392 = vcmp.ge.f32.partialorder %v1388, 0.0
      %v1393 = vmul.f32 %v1385, 0.01
      %v1394 = vmul.f32 %v1386, 0.01
      %v1395 = vmul.f32 %v1387, 0.01
      %v1396 = vmul.f32 %v1388, 0.01
      %v1397 = vsel %vm1389, %v1385, %v1393
      %v1398 = vsel %vm1390, %v1386, %v1394
      %v1399 = vsel %vm1391, %v1387, %v1395
      %v1400 = vsel %vm1392, %v1388, %v1396
      %v1402 = vperm.slane %v1377, 0
      %v1403 = vperm.slane %v1377, 1
      %v1406 = vmul.f32 %v1397, %v1402
      %v1407 = vmul.f32 %v1398, %v1403
      %v1408 = vmul.f32 %v1399, %v1402
      %v1409 = vmul.f32 %v1400, %v1403
      %v1411 = vperm.slane %v1379, 0
      %v1412 = vperm.slane %v1379, 1
      %v1415 = vadd.f32 %v1406, %v1411
      %v1416 = vadd.f32 %v1407, %v1412
      %v1417 = vadd.f32 %v1408, %v1411
      %v1418 = vadd.f32 %v1409, %v1412
      %1419 = vst [vmem:[#allocation4] sm:$0xff] 0.0
      %1420 = vst [vmem:[#allocation4 + $0x8] sm:$0xff] 0.0
      %1421 = vst [vmem:[#allocation4 + $0x10] sm:$0xff] 0.0
      %1422 = vst [vmem:[#allocation4 + $0x18] sm:$0xff] 0.0
      %1423 = vst [vmem:[#allocation4 + $0x20] sm:$0x3] 0.0
      %1424 = vst [vmem:[#allocation4 + $0x28] sm:$0x3] 0.0
      %v1429 = vrot.slane %v1415, 7
      %v1430 = vrot.slane %v1416, 7
      %v1431 = vrot.slane %v1417, 7
      %v1432 = vsel %vm268, %v1429, %v1431
      %v1433 = vrot.slane %v1418, 7
      %v1434 = vsel %vm268, %v1430, %v1433
      %1441 = vst [vmem:[#allocation4] sm:$0xfe] %v1429
      %1442 = vst [vmem:[#allocation4 + $0x8] sm:$0xfe] %v1430
      %1443 = vst [vmem:[#allocation4 + $0x10] sm:$0xff] %v1432
      %1444 = vst [vmem:[#allocation4 + $0x18] sm:$0xff] %v1434
      %1445 = vst [vmem:[#allocation4 + $0x20] sm:$0x1] %v1431
      %1446 = vst [vmem:[#allocation4 + $0x28] sm:$0x1] %v1433
      %v1447 = vld [vmem:[#allocation4] sm:$0xff]
      %v1448 = vld [vmem:[#allocation4 + $0x8] sm:$0xff]
      %v1449 = vld [vmem:[#allocation4 + $0x10] sm:$0xff]
      %v1450 = vld [vmem:[#allocation4 + $0x18] sm:$0xff]
      %v1451 = vld [vmem:[%s3] sm:$0xff]
      %v1452 = vld [vmem:[%s3 + $0x8] sm:$0xff]
      %v1453 = vld [vmem:[%s3 + $0x10] sm:$0xff]
      %v1454 = vld [vmem:[%s3 + $0x18] sm:$0xff]
      %v1455 = vld [vmem:[%s3 + $0x20] sm:$0xff]
      %v1456 = vld [vmem:[%s3 + $0x28] sm:$0xff]
      %v1457 = vld [vmem:[%s3 + $0x30] sm:$0xff]
      %v1458 = vld [vmem:[%s3 + $0x38] sm:$0xff]
      %v1459 = vld [vmem:[%s3 + $0x40] sm:$0xff]
      %v1460 = vld [vmem:[%s3 + $0x48] sm:$0xff]
      %v1461 = vld [vmem:[%s3 + $0x50] sm:$0xff]
      %v1462 = vld [vmem:[%s3 + $0x58] sm:$0xff]
      %v1463 = vld [vmem:[%s3 + $0x60] sm:$0xff]
      %v1464 = vld [vmem:[%s3 + $0x68] sm:$0xff]
      %v1465 = vld [vmem:[%s3 + $0x70] sm:$0xff]
      %v1466 = vld [vmem:[%s3 + $0x78] sm:$0xff]
      %v1467 = vld [vmem:[%s3 + $0x80] sm:$0xff]
      %v1468 = vld [vmem:[%s3 + $0x88] sm:$0xff]
      %v1469 = vld [vmem:[%s3 + $0x90] sm:$0xff]
      %v1470 = vld [vmem:[%s3 + $0x98] sm:$0xff]
      %v1471 = vld [vmem:[%s3 + $0xa0] sm:$0xff]
      %v1472 = vld [vmem:[%s3 + $0xa8] sm:$0xff]
      %v1473 = vld [vmem:[%s3 + $0xb0] sm:$0xff]
      %v1474 = vld [vmem:[%s3 + $0xb8] sm:$0xff]
      %v1475 = vld [vmem:[%s3 + $0xc0] sm:$0xff]
      %v1476 = vld [vmem:[%s3 + $0xc8] sm:$0xff]
      %v1477 = vld [vmem:[%s3 + $0xd0] sm:$0xff]
      %v1478 = vld [vmem:[%s3 + $0xd8] sm:$0xff]
      %v1479 = vld [vmem:[%s3 + $0xe0] sm:$0xff]
      %v1480 = vld [vmem:[%s3 + $0xe8] sm:$0xff]
      %v1481 = vld [vmem:[%s3 + $0xf0] sm:$0xff]
      %v1482 = vld [vmem:[%s3 + $0xf8] sm:$0xff]
      %v1483 = vld [vmem:[%s3 + $0x100] sm:$0xff]
      %v1484 = vld [vmem:[%s3 + $0x108] sm:$0xff]
      %v1485 = vld [vmem:[%s3 + $0x110] sm:$0xff]
      %v1486 = vld [vmem:[%s3 + $0x118] sm:$0xff]
      %v1487 = vld [vmem:[%s3 + $0x120] sm:$0xff]
      %v1488 = vld [vmem:[%s3 + $0x128] sm:$0xff]
      %v1489 = vld [vmem:[%s3 + $0x130] sm:$0xff]
      %v1490 = vld [vmem:[%s3 + $0x138] sm:$0xff]
      %v1491 = vld [vmem:[%s3 + $0x140] sm:$0xff]
      %v1492 = vld [vmem:[%s3 + $0x148] sm:$0xff]
      %v1493 = vld [vmem:[%s3 + $0x150] sm:$0xff]
      %v1494 = vld [vmem:[%s3 + $0x158] sm:$0xff]
      %v1495 = vld [vmem:[%s3 + $0x160] sm:$0xff]
      %v1496 = vld [vmem:[%s3 + $0x168] sm:$0xff]
      %v1497 = vld [vmem:[%s3 + $0x170] sm:$0xff]
      %v1498 = vld [vmem:[%s3 + $0x178] sm:$0xff]
      %v1499 = vld [vmem:[%s3 + $0x180] sm:$0xff]
      %v1500 = vld [vmem:[%s3 + $0x188] sm:$0xff]
      %v1501 = vld [vmem:[%s3 + $0x190] sm:$0xff]
      %v1502 = vld [vmem:[%s3 + $0x198] sm:$0xff]
      %v1503 = vld [vmem:[%s3 + $0x1a0] sm:$0xff]
      %v1504 = vld [vmem:[%s3 + $0x1a8] sm:$0xff]
      %v1505 = vld [vmem:[%s3 + $0x1b0] sm:$0xff]
      %v1506 = vld [vmem:[%s3 + $0x1b8] sm:$0xff]
      %v1507 = vld [vmem:[%s3 + $0x1c0] sm:$0xff]
      %v1508 = vld [vmem:[%s3 + $0x1c8] sm:$0xff]
      %v1509 = vld [vmem:[%s3 + $0x1d0] sm:$0xff]
      %v1510 = vld [vmem:[%s3 + $0x1d8] sm:$0xff]
      %v1511 = vld [vmem:[%s3 + $0x1e0] sm:$0xff]
      %v1512 = vld [vmem:[%s3 + $0x1e8] sm:$0xff]
      %v1513 = vld [vmem:[%s3 + $0x1f0] sm:$0xff]
      %v1514 = vld [vmem:[%s3 + $0x1f8] sm:$0xff]
      %v1515 = vld [vmem:[#allocation4] sm:$0xfc]
      %v1516 = vld [vmem:[#allocation4 + $0x8] sm:$0xfc]
      %v1517 = vld [vmem:[#allocation4 + $0x20] sm:$0x3]
      %v1518 = vld [vmem:[#allocation4 + $0x28] sm:$0x3]
      %s1519 = scalar_lea.vmem %s3, 512
      %v1520 = vld [vmem:[%s1519] sm:$0xff]
      %v1521 = vld [vmem:[%s1519 + $0x8] sm:$0xff]
      %v1522 = vld [vmem:[%s1519 + $0x10] sm:$0xff]
      %v1523 = vld [vmem:[%s1519 + $0x18] sm:$0xff]
      %v1524 = vld [vmem:[%s1519 + $0x20] sm:$0xff]
      %v1525 = vld [vmem:[%s1519 + $0x28] sm:$0xff]
      %v1526 = vld [vmem:[%s1519 + $0x30] sm:$0xff]
      %v1527 = vld [vmem:[%s1519 + $0x38] sm:$0xff]
      %v1528 = vld [vmem:[%s1519 + $0x40] sm:$0xff]
      %v1529 = vld [vmem:[%s1519 + $0x48] sm:$0xff]
      %v1530 = vld [vmem:[%s1519 + $0x50] sm:$0xff]
      %v1531 = vld [vmem:[%s1519 + $0x58] sm:$0xff]
      %v1532 = vld [vmem:[%s1519 + $0x60] sm:$0xff]
      %v1533 = vld [vmem:[%s1519 + $0x68] sm:$0xff]
      %v1534 = vld [vmem:[%s1519 + $0x70] sm:$0xff]
      %v1535 = vld [vmem:[%s1519 + $0x78] sm:$0xff]
      %v1536 = vld [vmem:[%s1519 + $0x80] sm:$0xff]
      %v1537 = vld [vmem:[%s1519 + $0x88] sm:$0xff]
      %v1538 = vld [vmem:[%s1519 + $0x90] sm:$0xff]
      %v1539 = vld [vmem:[%s1519 + $0x98] sm:$0xff]
      %v1540 = vld [vmem:[%s1519 + $0xa0] sm:$0xff]
      %v1541 = vld [vmem:[%s1519 + $0xa8] sm:$0xff]
      %v1542 = vld [vmem:[%s1519 + $0xb0] sm:$0xff]
      %v1543 = vld [vmem:[%s1519 + $0xb8] sm:$0xff]
      %v1544 = vld [vmem:[%s1519 + $0xc0] sm:$0xff]
      %v1545 = vld [vmem:[%s1519 + $0xc8] sm:$0xff]
      %v1546 = vld [vmem:[%s1519 + $0xd0] sm:$0xff]
      %v1547 = vld [vmem:[%s1519 + $0xd8] sm:$0xff]
      %v1548 = vld [vmem:[%s1519 + $0xe0] sm:$0xff]
      %v1549 = vld [vmem:[%s1519 + $0xe8] sm:$0xff]
      %v1550 = vld [vmem:[%s1519 + $0xf0] sm:$0xff]
      %v1551 = vld [vmem:[%s1519 + $0xf8] sm:$0xff]
      %v1552 = vld [vmem:[%s1519 + $0x100] sm:$0xff]
      %v1553 = vld [vmem:[%s1519 + $0x108] sm:$0xff]
      %v1554 = vld [vmem:[%s1519 + $0x110] sm:$0xff]
      %v1555 = vld [vmem:[%s1519 + $0x118] sm:$0xff]
      %v1556 = vld [vmem:[%s1519 + $0x120] sm:$0xff]
      %v1557 = vld [vmem:[%s1519 + $0x128] sm:$0xff]
      %v1558 = vld [vmem:[%s1519 + $0x130] sm:$0xff]
      %v1559 = vld [vmem:[%s1519 + $0x138] sm:$0xff]
      %v1560 = vld [vmem:[%s1519 + $0x140] sm:$0xff]
      %v1561 = vld [vmem:[%s1519 + $0x148] sm:$0xff]
      %v1562 = vld [vmem:[%s1519 + $0x150] sm:$0xff]
      %v1563 = vld [vmem:[%s1519 + $0x158] sm:$0xff]
      %v1564 = vld [vmem:[%s1519 + $0x160] sm:$0xff]
      %v1565 = vld [vmem:[%s1519 + $0x168] sm:$0xff]
      %v1566 = vld [vmem:[%s1519 + $0x170] sm:$0xff]
      %v1567 = vld [vmem:[%s1519 + $0x178] sm:$0xff]
      %v1568 = vld [vmem:[%s1519 + $0x180] sm:$0xff]
      %v1569 = vld [vmem:[%s1519 + $0x188] sm:$0xff]
      %v1570 = vld [vmem:[%s1519 + $0x190] sm:$0xff]
      %v1571 = vld [vmem:[%s1519 + $0x198] sm:$0xff]
      %v1572 = vld [vmem:[%s1519 + $0x1a0] sm:$0xff]
      %v1573 = vld [vmem:[%s1519 + $0x1a8] sm:$0xff]
      %v1574 = vld [vmem:[%s1519 + $0x1b0] sm:$0xff]
      %v1575 = vld [vmem:[%s1519 + $0x1b8] sm:$0xff]
      %v1576 = vld [vmem:[%s1519 + $0x1c0] sm:$0xff]
      %v1577 = vld [vmem:[%s1519 + $0x1c8] sm:$0xff]
      %v1578 = vld [vmem:[%s1519 + $0x1d0] sm:$0xff]
      %v1579 = vld [vmem:[%s1519 + $0x1d8] sm:$0xff]
      %v1580 = vld [vmem:[%s1519 + $0x1e0] sm:$0xff]
      %v1581 = vld [vmem:[%s1519 + $0x1e8] sm:$0xff]
      %v1582 = vld [vmem:[%s1519 + $0x1f0] sm:$0xff]
      %v1583 = vld [vmem:[%s1519 + $0x1f8] sm:$0xff]
      %v1590 = vrot.slane %v1515, 2
      %v1591 = vrot.slane %v1449, 2
      %v1592 = vsel %vm663, %v1590, %v1591
      %v1593 = vrot.slane %v1516, 2
      %v1594 = vrot.slane %v1450, 2
      %v1595 = vsel %vm663, %v1593, %v1594
      %v1596 = vrot.slane %v1517, 2
      %v1597 = vsel %vm663, %v1591, %v1596
      %v1598 = vrot.slane %v1518, 2
      %v1599 = vsel %vm663, %v1594, %v1598
      %1604 = vmatpush.msra.mxu0 %v1550
      %1605 = vmatpush.msra.mxu0 %v1548
      %1606 = vmatpush.msra.mxu0 %v1546
      %1607 = vmatpush.msra.mxu0 %v1544
      %1608 = vmatpush.msra.mxu0 %v1542
      %1609 = vmatpush.msra.mxu0 %v1540
      %1610 = vmatpush.msra.mxu0 %v1538
      %1611 = vmatpush.msra.mxu0 %v1536
      %1612 = vmatpush.msra.mxu0 %v1534
      %1613 = vmatpush.msra.mxu0 %v1532
      %1614 = vmatpush.msra.mxu0 %v1530
      %1615 = vmatpush.msra.mxu0 %v1528
      %1616 = vmatpush.msra.mxu0 %v1526
      %1617 = vmatpush.msra.mxu0 %v1524
      %1618 = vmatpush.msra.mxu0 %v1522
      %1619 = vmatpush.msra.mxu0 %v1520
      %1620 = vmatmul.f32.gmra.mxu0 %v1592
      %v1621 = vpop.f32.mrf.mxu0
      %v1622 = vadd.f32 0.0, %v1621
      %1623 = vmatmul.f32.gmra.mxu0 %v1597
      %v1624 = vpop.f32.mrf.mxu0
      %v1625 = vadd.f32 0.0, %v1624
      %1626 = vdwg.mxu0
      %1627 = vmatpush.msra.mxu0 %v1582
      %1628 = vmatpush.msra.mxu0 %v1580
      %1629 = vmatpush.msra.mxu0 %v1578
      %1630 = vmatpush.msra.mxu0 %v1576
      %1631 = vmatpush.msra.mxu0 %v1574
      %1632 = vmatpush.msra.mxu0 %v1572
      %1633 = vmatpush.msra.mxu0 %v1570
      %1634 = vmatpush.msra.mxu0 %v1568
      %1635 = vmatpush.msra.mxu0 %v1566
      %1636 = vmatpush.msra.mxu0 %v1564
      %1637 = vmatpush.msra.mxu0 %v1562
      %1638 = vmatpush.msra.mxu0 %v1560
      %1639 = vmatpush.msra.mxu0 %v1558
      %1640 = vmatpush.msra.mxu0 %v1556
      %1641 = vmatpush.msra.mxu0 %v1554
      %1642 = vmatpush.msra.mxu0 %v1552
      %1643 = vmatmul.f32.gmra.mxu0 %v1595
      %v1644 = vpop.f32.mrf.mxu0
      %v1645 = vadd.f32 %v1622, %v1644
      %1646 = vmatmul.f32.gmra.mxu0 %v1599
      %v1647 = vpop.f32.mrf.mxu0
      %v1648 = vadd.f32 %v1625, %v1647
      %1649 = vdwg.mxu0
      %1650 = vmatpush.msra.mxu0 %v1551
      %1651 = vmatpush.msra.mxu0 %v1549
      %1652 = vmatpush.msra.mxu0 %v1547
      %1653 = vmatpush.msra.mxu0 %v1545
      %1654 = vmatpush.msra.mxu0 %v1543
      %1655 = vmatpush.msra.mxu0 %v1541
      %1656 = vmatpush.msra.mxu0 %v1539
      %1657 = vmatpush.msra.mxu0 %v1537
      %1658 = vmatpush.msra.mxu0 %v1535
      %1659 = vmatpush.msra.mxu0 %v1533
      %1660 = vmatpush.msra.mxu0 %v1531
      %1661 = vmatpush.msra.mxu0 %v1529
      %1662 = vmatpush.msra.mxu0 %v1527
      %1663 = vmatpush.msra.mxu0 %v1525
      %1664 = vmatpush.msra.mxu0 %v1523
      %1665 = vmatpush.msra.mxu0 %v1521
      %1666 = vmatmul.f32.gmra.mxu0 %v1592
      %v1667 = vpop.f32.mrf.mxu0
      %v1668 = vadd.f32 0.0, %v1667
      %1669 = vmatmul.f32.gmra.mxu0 %v1597
      %v1670 = vpop.f32.mrf.mxu0
      %v1671 = vadd.f32 0.0, %v1670
      %1672 = vdwg.mxu0
      %1673 = vmatpush.msra.mxu0 %v1583
      %1674 = vmatpush.msra.mxu0 %v1581
      %1675 = vmatpush.msra.mxu0 %v1579
      %1676 = vmatpush.msra.mxu0 %v1577
      %1677 = vmatpush.msra.mxu0 %v1575
      %1678 = vmatpush.msra.mxu0 %v1573
      %1679 = vmatpush.msra.mxu0 %v1571
      %1680 = vmatpush.msra.mxu0 %v1569
      %1681 = vmatpush.msra.mxu0 %v1567
      %1682 = vmatpush.msra.mxu0 %v1565
      %1683 = vmatpush.msra.mxu0 %v1563
      %1684 = vmatpush.msra.mxu0 %v1561
      %1685 = vmatpush.msra.mxu0 %v1559
      %1686 = vmatpush.msra.mxu0 %v1557
      %1687 = vmatpush.msra.mxu0 %v1555
      %1688 = vmatpush.msra.mxu0 %v1553
      %1689 = vmatmul.f32.gmra.mxu0 %v1595
      %v1690 = vpop.f32.mrf.mxu0
      %v1691 = vadd.f32 %v1668, %v1690
      %1692 = vmatmul.f32.gmra.mxu0 %v1599
      %v1693 = vpop.f32.mrf.mxu0
      %v1694 = vadd.f32 %v1671, %v1693
      %1695 = vdwg.mxu0
      %1696 = vmatpush.msra.mxu0 %v1481
      %1697 = vmatpush.msra.mxu0 %v1479
      %1698 = vmatpush.msra.mxu0 %v1477
      %1699 = vmatpush.msra.mxu0 %v1475
      %1700 = vmatpush.msra.mxu0 %v1473
      %1701 = vmatpush.msra.mxu0 %v1471
      %1702 = vmatpush.msra.mxu0 %v1469
      %1703 = vmatpush.msra.mxu0 %v1467
      %1704 = vmatpush.msra.mxu0 %v1465
      %1705 = vmatpush.msra.mxu0 %v1463
      %1706 = vmatpush.msra.mxu0 %v1461
      %1707 = vmatpush.msra.mxu0 %v1459
      %1708 = vmatpush.msra.mxu0 %v1457
      %1709 = vmatpush.msra.mxu0 %v1455
      %1710 = vmatpush.msra.mxu0 %v1453
      %1711 = vmatpush.msra.mxu0 %v1451
      %1712 = vmatmul.f32.gmra.mxu0 %v1447
      %v1713 = vpop.f32.mrf.mxu0
      %v1714 = vadd.f32 %v1645, %v1713
      %1715 = vmatmul.f32.gmra.mxu0 %v1449
      %v1716 = vpop.f32.mrf.mxu0
      %v1717 = vadd.f32 %v1648, %v1716
      %1718 = vdwg.mxu0
      %1719 = vmatpush.msra.mxu0 %v1513
      %1720 = vmatpush.msra.mxu0 %v1511
      %1721 = vmatpush.msra.mxu0 %v1509
      %1722 = vmatpush.msra.mxu0 %v1507
      %1723 = vmatpush.msra.mxu0 %v1505
      %1724 = vmatpush.msra.mxu0 %v1503
      %1725 = vmatpush.msra.mxu0 %v1501
      %1726 = vmatpush.msra.mxu0 %v1499
      %1727 = vmatpush.msra.mxu0 %v1497
      %1728 = vmatpush.msra.mxu0 %v1495
      %1729 = vmatpush.msra.mxu0 %v1493
      %1730 = vmatpush.msra.mxu0 %v1491
      %1731 = vmatpush.msra.mxu0 %v1489
      %1732 = vmatpush.msra.mxu0 %v1487
      %1733 = vmatpush.msra.mxu0 %v1485
      %1734 = vmatpush.msra.mxu0 %v1483
      %1735 = vmatmul.f32.gmra.mxu0 %v1448
      %v1736 = vpop.f32.mrf.mxu0
      %v1737 = vadd.f32 %v1714, %v1736
      %1738 = vmatmul.f32.gmra.mxu0 %v1450
      %v1739 = vpop.f32.mrf.mxu0
      %v1740 = vadd.f32 %v1717, %v1739
      %1741 = vdwg.mxu0
      %1742 = vmatpush.msra.mxu0 %v1482
      %1743 = vmatpush.msra.mxu0 %v1480
      %1744 = vmatpush.msra.mxu0 %v1478
      %1745 = vmatpush.msra.mxu0 %v1476
      %1746 = vmatpush.msra.mxu0 %v1474
      %1747 = vmatpush.msra.mxu0 %v1472
      %1748 = vmatpush.msra.mxu0 %v1470
      %1749 = vmatpush.msra.mxu0 %v1468
      %1750 = vmatpush.msra.mxu0 %v1466
      %1751 = vmatpush.msra.mxu0 %v1464
      %1752 = vmatpush.msra.mxu0 %v1462
      %1753 = vmatpush.msra.mxu0 %v1460
      %1754 = vmatpush.msra.mxu0 %v1458
      %1755 = vmatpush.msra.mxu0 %v1456
      %1756 = vmatpush.msra.mxu0 %v1454
      %1757 = vmatpush.msra.mxu0 %v1452
      %1758 = vmatmul.f32.gmra.mxu0 %v1447
      %v1759 = vpop.f32.mrf.mxu0
      %v1760 = vadd.f32 %v1691, %v1759
      %1761 = vmatmul.f32.gmra.mxu0 %v1449
      %v1762 = vpop.f32.mrf.mxu0
      %v1763 = vadd.f32 %v1694, %v1762
      %1764 = vdwg.mxu0
      %1765 = vmatpush.msra.mxu0 %v1514
      %1766 = vmatpush.msra.mxu0 %v1512
      %1767 = vmatpush.msra.mxu0 %v1510
      %1768 = vmatpush.msra.mxu0 %v1508
      %1769 = vmatpush.msra.mxu0 %v1506
      %1770 = vmatpush.msra.mxu0 %v1504
      %1771 = vmatpush.msra.mxu0 %v1502
      %1772 = vmatpush.msra.mxu0 %v1500
      %1773 = vmatpush.msra.mxu0 %v1498
      %1774 = vmatpush.msra.mxu0 %v1496
      %1775 = vmatpush.msra.mxu0 %v1494
      %1776 = vmatpush.msra.mxu0 %v1492
      %1777 = vmatpush.msra.mxu0 %v1490
      %1778 = vmatpush.msra.mxu0 %v1488
      %1779 = vmatpush.msra.mxu0 %v1486
      %1780 = vmatpush.msra.mxu0 %v1484
      %1781 = vmatmul.f32.gmra.mxu0 %v1448
      %v1782 = vpop.f32.mrf.mxu0
      %v1783 = vadd.f32 %v1760, %v1782
      %1784 = vmatmul.f32.gmra.mxu0 %v1450
      %v1785 = vpop.f32.mrf.mxu0
      %v1786 = vadd.f32 %v1763, %v1785
      %1787 = vdwg.mxu0
      %s1788 = scalar_lea.vmem %s5, 6
      %v1789 = vld [vmem:[%s1788] ss:$8 sm:$0x3]
      %s1790 = scalar_lea.vmem %s5, 7
      %v1791 = vld [vmem:[%s1790] ss:$8 sm:$0x3]
      %s1792 = scalar_lea.vmem %s5, 16
      %v1793 = vld [vmem:[%s1792] ss:$8 sm:$0x3]
      %v1795 = vperm.slane %v1789, 0
      %v1796 = vperm.slane %v1789, 1
      %v1799 = vadd.f32 %v1737, %v1795
      %v1800 = vadd.f32 %v1783, %v1796
      %v1801 = vadd.f32 %v1740, %v1795
      %v1802 = vadd.f32 %v1786, %v1796
      %vm1803 = vcmp.ge.f32.partialorder %v1799, 0.0
      %vm1804 = vcmp.ge.f32.partialorder %v1800, 0.0
      %vm1805 = vcmp.ge.f32.partialorder %v1801, 0.0
      %vm1806 = vcmp.ge.f32.partialorder %v1802, 0.0
      %v1807 = vmul.f32 %v1799, 0.01
      %v1808 = vmul.f32 %v1800, 0.01
      %v1809 = vmul.f32 %v1801, 0.01
      %v1810 = vmul.f32 %v1802, 0.01
      %v1811 = vsel %vm1803, %v1799, %v1807
      %v1812 = vsel %vm1804, %v1800, %v1808
      %v1813 = vsel %vm1805, %v1801, %v1809
      %v1814 = vsel %vm1806, %v1802, %v1810
      %v1816 = vperm.slane %v1791, 0
      %v1817 = vperm.slane %v1791, 1
      %v1820 = vmul.f32 %v1811, %v1816
      %v1821 = vmul.f32 %v1812, %v1817
      %v1822 = vmul.f32 %v1813, %v1816
      %v1823 = vmul.f32 %v1814, %v1817
      %v1825 = vperm.slane %v1793, 0
      %v1826 = vperm.slane %v1793, 1
      %v1829 = vadd.f32 %v1820, %v1825
      %v1830 = vadd.f32 %v1821, %v1826
      %v1831 = vadd.f32 %v1822, %v1825
      %v1832 = vadd.f32 %v1823, %v1826
      %v1833 = vld [vmem:[%s4] sm:$0xff]
      %v1834 = vld [vmem:[%s4 + $0x8] sm:$0xff]
      %v1835 = vld [vmem:[%s4 + $0x10] sm:$0xff]
      %v1836 = vld [vmem:[%s4 + $0x18] sm:$0xff]
      %v1837 = vld [vmem:[%s4 + $0x20] sm:$0xff]
      %v1838 = vld [vmem:[%s4 + $0x28] sm:$0xff]
      %v1839 = vld [vmem:[%s4 + $0x30] sm:$0xff]
      %v1840 = vld [vmem:[%s4 + $0x38] sm:$0xff]
      %v1841 = vld [vmem:[%s4 + $0x40] sm:$0xff]
      %v1842 = vld [vmem:[%s4 + $0x48] sm:$0xff]
      %v1843 = vld [vmem:[%s4 + $0x50] sm:$0xff]
      %v1844 = vld [vmem:[%s4 + $0x58] sm:$0xff]
      %v1845 = vld [vmem:[%s4 + $0x60] sm:$0xff]
      %v1846 = vld [vmem:[%s4 + $0x68] sm:$0xff]
      %v1847 = vld [vmem:[%s4 + $0x70] sm:$0xff]
      %v1848 = vld [vmem:[%s4 + $0x78] sm:$0xff]
      %v1849 = vld [vmem:[%s4 + $0x80] sm:$0xff]
      %v1850 = vld [vmem:[%s4 + $0x88] sm:$0xff]
      %v1851 = vld [vmem:[%s4 + $0x90] sm:$0xff]
      %v1852 = vld [vmem:[%s4 + $0x98] sm:$0xff]
      %v1853 = vld [vmem:[%s4 + $0xa0] sm:$0xff]
      %v1854 = vld [vmem:[%s4 + $0xa8] sm:$0xff]
      %v1855 = vld [vmem:[%s4 + $0xb0] sm:$0xff]
      %v1856 = vld [vmem:[%s4 + $0xb8] sm:$0xff]
      %v1857 = vld [vmem:[%s4 + $0xc0] sm:$0xff]
      %v1858 = vld [vmem:[%s4 + $0xc8] sm:$0xff]
      %v1859 = vld [vmem:[%s4 + $0xd0] sm:$0xff]
      %v1860 = vld [vmem:[%s4 + $0xd8] sm:$0xff]
      %v1861 = vld [vmem:[%s4 + $0xe0] sm:$0xff]
      %v1862 = vld [vmem:[%s4 + $0xe8] sm:$0xff]
      %v1863 = vld [vmem:[%s4 + $0xf0] sm:$0xff]
      %v1864 = vld [vmem:[%s4 + $0xf8] sm:$0xff]
      %v1865 = vld [vmem:[%s4 + $0x100] sm:$0xff]
      %v1866 = vld [vmem:[%s4 + $0x108] sm:$0xff]
      %v1867 = vld [vmem:[%s4 + $0x110] sm:$0xff]
      %v1868 = vld [vmem:[%s4 + $0x118] sm:$0xff]
      %v1869 = vld [vmem:[%s4 + $0x120] sm:$0xff]
      %v1870 = vld [vmem:[%s4 + $0x128] sm:$0xff]
      %v1871 = vld [vmem:[%s4 + $0x130] sm:$0xff]
      %v1872 = vld [vmem:[%s4 + $0x138] sm:$0xff]
      %v1873 = vld [vmem:[%s4 + $0x140] sm:$0xff]
      %v1874 = vld [vmem:[%s4 + $0x148] sm:$0xff]
      %v1875 = vld [vmem:[%s4 + $0x150] sm:$0xff]
      %v1876 = vld [vmem:[%s4 + $0x158] sm:$0xff]
      %v1877 = vld [vmem:[%s4 + $0x160] sm:$0xff]
      %v1878 = vld [vmem:[%s4 + $0x168] sm:$0xff]
      %v1879 = vld [vmem:[%s4 + $0x170] sm:$0xff]
      %v1880 = vld [vmem:[%s4 + $0x178] sm:$0xff]
      %v1881 = vld [vmem:[%s4 + $0x180] sm:$0xff]
      %v1882 = vld [vmem:[%s4 + $0x188] sm:$0xff]
      %v1883 = vld [vmem:[%s4 + $0x190] sm:$0xff]
      %v1884 = vld [vmem:[%s4 + $0x198] sm:$0xff]
      %v1885 = vld [vmem:[%s4 + $0x1a0] sm:$0xff]
      %v1886 = vld [vmem:[%s4 + $0x1a8] sm:$0xff]
      %v1887 = vld [vmem:[%s4 + $0x1b0] sm:$0xff]
      %v1888 = vld [vmem:[%s4 + $0x1b8] sm:$0xff]
      %v1889 = vld [vmem:[%s4 + $0x1c0] sm:$0xff]
      %v1890 = vld [vmem:[%s4 + $0x1c8] sm:$0xff]
      %v1891 = vld [vmem:[%s4 + $0x1d0] sm:$0xff]
      %v1892 = vld [vmem:[%s4 + $0x1d8] sm:$0xff]
      %v1893 = vld [vmem:[%s4 + $0x1e0] sm:$0xff]
      %v1894 = vld [vmem:[%s4 + $0x1e8] sm:$0xff]
      %v1895 = vld [vmem:[%s4 + $0x1f0] sm:$0xff]
      %v1896 = vld [vmem:[%s4 + $0x1f8] sm:$0xff]
      %s1897 = scalar_lea.vmem %s4, 512
      %v1898 = vld [vmem:[%s1897] sm:$0xff]
      %v1899 = vld [vmem:[%s1897 + $0x8] sm:$0xff]
      %v1900 = vld [vmem:[%s1897 + $0x10] sm:$0xff]
      %v1901 = vld [vmem:[%s1897 + $0x18] sm:$0xff]
      %v1902 = vld [vmem:[%s1897 + $0x20] sm:$0xff]
      %v1903 = vld [vmem:[%s1897 + $0x28] sm:$0xff]
      %v1904 = vld [vmem:[%s1897 + $0x30] sm:$0xff]
      %v1905 = vld [vmem:[%s1897 + $0x38] sm:$0xff]
      %v1906 = vld [vmem:[%s1897 + $0x40] sm:$0xff]
      %v1907 = vld [vmem:[%s1897 + $0x48] sm:$0xff]
      %v1908 = vld [vmem:[%s1897 + $0x50] sm:$0xff]
      %v1909 = vld [vmem:[%s1897 + $0x58] sm:$0xff]
      %v1910 = vld [vmem:[%s1897 + $0x60] sm:$0xff]
      %v1911 = vld [vmem:[%s1897 + $0x68] sm:$0xff]
      %v1912 = vld [vmem:[%s1897 + $0x70] sm:$0xff]
      %v1913 = vld [vmem:[%s1897 + $0x78] sm:$0xff]
      %v1914 = vld [vmem:[%s1897 + $0x80] sm:$0xff]
      %v1915 = vld [vmem:[%s1897 + $0x88] sm:$0xff]
      %v1916 = vld [vmem:[%s1897 + $0x90] sm:$0xff]
      %v1917 = vld [vmem:[%s1897 + $0x98] sm:$0xff]
      %v1918 = vld [vmem:[%s1897 + $0xa0] sm:$0xff]
      %v1919 = vld [vmem:[%s1897 + $0xa8] sm:$0xff]
      %v1920 = vld [vmem:[%s1897 + $0xb0] sm:$0xff]
      %v1921 = vld [vmem:[%s1897 + $0xb8] sm:$0xff]
      %v1922 = vld [vmem:[%s1897 + $0xc0] sm:$0xff]
      %v1923 = vld [vmem:[%s1897 + $0xc8] sm:$0xff]
      %v1924 = vld [vmem:[%s1897 + $0xd0] sm:$0xff]
      %v1925 = vld [vmem:[%s1897 + $0xd8] sm:$0xff]
      %v1926 = vld [vmem:[%s1897 + $0xe0] sm:$0xff]
      %v1927 = vld [vmem:[%s1897 + $0xe8] sm:$0xff]
      %v1928 = vld [vmem:[%s1897 + $0xf0] sm:$0xff]
      %v1929 = vld [vmem:[%s1897 + $0xf8] sm:$0xff]
      %v1930 = vld [vmem:[%s1897 + $0x100] sm:$0xff]
      %v1931 = vld [vmem:[%s1897 + $0x108] sm:$0xff]
      %v1932 = vld [vmem:[%s1897 + $0x110] sm:$0xff]
      %v1933 = vld [vmem:[%s1897 + $0x118] sm:$0xff]
      %v1934 = vld [vmem:[%s1897 + $0x120] sm:$0xff]
      %v1935 = vld [vmem:[%s1897 + $0x128] sm:$0xff]
      %v1936 = vld [vmem:[%s1897 + $0x130] sm:$0xff]
      %v1937 = vld [vmem:[%s1897 + $0x138] sm:$0xff]
      %v1938 = vld [vmem:[%s1897 + $0x140] sm:$0xff]
      %v1939 = vld [vmem:[%s1897 + $0x148] sm:$0xff]
      %v1940 = vld [vmem:[%s1897 + $0x150] sm:$0xff]
      %v1941 = vld [vmem:[%s1897 + $0x158] sm:$0xff]
      %v1942 = vld [vmem:[%s1897 + $0x160] sm:$0xff]
      %v1943 = vld [vmem:[%s1897 + $0x168] sm:$0xff]
      %v1944 = vld [vmem:[%s1897 + $0x170] sm:$0xff]
      %v1945 = vld [vmem:[%s1897 + $0x178] sm:$0xff]
      %v1946 = vld [vmem:[%s1897 + $0x180] sm:$0xff]
      %v1947 = vld [vmem:[%s1897 + $0x188] sm:$0xff]
      %v1948 = vld [vmem:[%s1897 + $0x190] sm:$0xff]
      %v1949 = vld [vmem:[%s1897 + $0x198] sm:$0xff]
      %v1950 = vld [vmem:[%s1897 + $0x1a0] sm:$0xff]
      %v1951 = vld [vmem:[%s1897 + $0x1a8] sm:$0xff]
      %v1952 = vld [vmem:[%s1897 + $0x1b0] sm:$0xff]
      %v1953 = vld [vmem:[%s1897 + $0x1b8] sm:$0xff]
      %v1954 = vld [vmem:[%s1897 + $0x1c0] sm:$0xff]
      %v1955 = vld [vmem:[%s1897 + $0x1c8] sm:$0xff]
      %v1956 = vld [vmem:[%s1897 + $0x1d0] sm:$0xff]
      %v1957 = vld [vmem:[%s1897 + $0x1d8] sm:$0xff]
      %v1958 = vld [vmem:[%s1897 + $0x1e0] sm:$0xff]
      %v1959 = vld [vmem:[%s1897 + $0x1e8] sm:$0xff]
      %v1960 = vld [vmem:[%s1897 + $0x1f0] sm:$0xff]
      %v1961 = vld [vmem:[%s1897 + $0x1f8] sm:$0xff]
      %1962 = vmatpush.msra.mxu0 %v1928
      %1963 = vmatpush.msra.mxu0 %v1926
      %1964 = vmatpush.msra.mxu0 %v1924
      %1965 = vmatpush.msra.mxu0 %v1922
      %1966 = vmatpush.msra.mxu0 %v1920
      %1967 = vmatpush.msra.mxu0 %v1918
      %1968 = vmatpush.msra.mxu0 %v1916
      %1969 = vmatpush.msra.mxu0 %v1914
      %1970 = vmatpush.msra.mxu0 %v1912
      %1971 = vmatpush.msra.mxu0 %v1910
      %1972 = vmatpush.msra.mxu0 %v1908
      %1973 = vmatpush.msra.mxu0 %v1906
      %1974 = vmatpush.msra.mxu0 %v1904
      %1975 = vmatpush.msra.mxu0 %v1902
      %1976 = vmatpush.msra.mxu0 %v1900
      %1977 = vmatpush.msra.mxu0 %v1898
      %1978 = vmatmul.f32.gmra.mxu0 %v1415
      %v1979 = vpop.f32.mrf.mxu0
      %v1980 = vadd.f32 0.0, %v1979
      %1981 = vmatmul.f32.gmra.mxu0 %v1417
      %v1982 = vpop.f32.mrf.mxu0
      %v1983 = vadd.f32 0.0, %v1982
      %1984 = vdwg.mxu0
      %1985 = vmatpush.msra.mxu0 %v1960
      %1986 = vmatpush.msra.mxu0 %v1958
      %1987 = vmatpush.msra.mxu0 %v1956
      %1988 = vmatpush.msra.mxu0 %v1954
      %1989 = vmatpush.msra.mxu0 %v1952
      %1990 = vmatpush.msra.mxu0 %v1950
      %1991 = vmatpush.msra.mxu0 %v1948
      %1992 = vmatpush.msra.mxu0 %v1946
      %1993 = vmatpush.msra.mxu0 %v1944
      %1994 = vmatpush.msra.mxu0 %v1942
      %1995 = vmatpush.msra.mxu0 %v1940
      %1996 = vmatpush.msra.mxu0 %v1938
      %1997 = vmatpush.msra.mxu0 %v1936
      %1998 = vmatpush.msra.mxu0 %v1934
      %1999 = vmatpush.msra.mxu0 %v1932
      %2000 = vmatpush.msra.mxu0 %v1930
      %2001 = vmatmul.f32.gmra.mxu0 %v1416
      %v2002 = vpop.f32.mrf.mxu0
      %v2003 = vadd.f32 %v1980, %v2002
      %2004 = vmatmul.f32.gmra.mxu0 %v1418
      %v2005 = vpop.f32.mrf.mxu0
      %v2006 = vadd.f32 %v1983, %v2005
      %2007 = vdwg.mxu0
      %2008 = vmatpush.msra.mxu0 %v1929
      %2009 = vmatpush.msra.mxu0 %v1927
      %2010 = vmatpush.msra.mxu0 %v1925
      %2011 = vmatpush.msra.mxu0 %v1923
      %2012 = vmatpush.msra.mxu0 %v1921
      %2013 = vmatpush.msra.mxu0 %v1919
      %2014 = vmatpush.msra.mxu0 %v1917
      %2015 = vmatpush.msra.mxu0 %v1915
      %2016 = vmatpush.msra.mxu0 %v1913
      %2017 = vmatpush.msra.mxu0 %v1911
      %2018 = vmatpush.msra.mxu0 %v1909
      %2019 = vmatpush.msra.mxu0 %v1907
      %2020 = vmatpush.msra.mxu0 %v1905
      %2021 = vmatpush.msra.mxu0 %v1903
      %2022 = vmatpush.msra.mxu0 %v1901
      %2023 = vmatpush.msra.mxu0 %v1899
      %2024 = vmatmul.f32.gmra.mxu0 %v1415
      %v2025 = vpop.f32.mrf.mxu0
      %v2026 = vadd.f32 0.0, %v2025
      %2027 = vmatmul.f32.gmra.mxu0 %v1417
      %v2028 = vpop.f32.mrf.mxu0
      %v2029 = vadd.f32 0.0, %v2028
      %2030 = vdwg.mxu0
      %2031 = vmatpush.msra.mxu0 %v1961
      %2032 = vmatpush.msra.mxu0 %v1959
      %2033 = vmatpush.msra.mxu0 %v1957
      %2034 = vmatpush.msra.mxu0 %v1955
      %2035 = vmatpush.msra.mxu0 %v1953
      %2036 = vmatpush.msra.mxu0 %v1951
      %2037 = vmatpush.msra.mxu0 %v1949
      %2038 = vmatpush.msra.mxu0 %v1947
      %2039 = vmatpush.msra.mxu0 %v1945
      %2040 = vmatpush.msra.mxu0 %v1943
      %2041 = vmatpush.msra.mxu0 %v1941
      %2042 = vmatpush.msra.mxu0 %v1939
      %2043 = vmatpush.msra.mxu0 %v1937
      %2044 = vmatpush.msra.mxu0 %v1935
      %2045 = vmatpush.msra.mxu0 %v1933
      %2046 = vmatpush.msra.mxu0 %v1931
      %2047 = vmatmul.f32.gmra.mxu0 %v1416
      %v2048 = vpop.f32.mrf.mxu0
      %v2049 = vadd.f32 %v2026, %v2048
      %2050 = vmatmul.f32.gmra.mxu0 %v1418
      %v2051 = vpop.f32.mrf.mxu0
      %v2052 = vadd.f32 %v2029, %v2051
      %2053 = vdwg.mxu0
      %2054 = vmatpush.msra.mxu0 %v1863
      %2055 = vmatpush.msra.mxu0 %v1861
      %2056 = vmatpush.msra.mxu0 %v1859
      %2057 = vmatpush.msra.mxu0 %v1857
      %2058 = vmatpush.msra.mxu0 %v1855
      %2059 = vmatpush.msra.mxu0 %v1853
      %2060 = vmatpush.msra.mxu0 %v1851
      %2061 = vmatpush.msra.mxu0 %v1849
      %2062 = vmatpush.msra.mxu0 %v1847
      %2063 = vmatpush.msra.mxu0 %v1845
      %2064 = vmatpush.msra.mxu0 %v1843
      %2065 = vmatpush.msra.mxu0 %v1841
      %2066 = vmatpush.msra.mxu0 %v1839
      %2067 = vmatpush.msra.mxu0 %v1837
      %2068 = vmatpush.msra.mxu0 %v1835
      %2069 = vmatpush.msra.mxu0 %v1833
      %2070 = vmatmul.f32.gmra.mxu0 %v816
      %v2071 = vpop.f32.mrf.mxu0
      %v2072 = vadd.f32 %v2003, %v2071
      %2073 = vmatmul.f32.gmra.mxu0 %v818
      %v2074 = vpop.f32.mrf.mxu0
      %v2075 = vadd.f32 %v2006, %v2074
      %2076 = vdwg.mxu0
      %2077 = vmatpush.msra.mxu0 %v1895
      %2078 = vmatpush.msra.mxu0 %v1893
      %2079 = vmatpush.msra.mxu0 %v1891
      %2080 = vmatpush.msra.mxu0 %v1889
      %2081 = vmatpush.msra.mxu0 %v1887
      %2082 = vmatpush.msra.mxu0 %v1885
      %2083 = vmatpush.msra.mxu0 %v1883
      %2084 = vmatpush.msra.mxu0 %v1881
      %2085 = vmatpush.msra.mxu0 %v1879
      %2086 = vmatpush.msra.mxu0 %v1877
      %2087 = vmatpush.msra.mxu0 %v1875
      %2088 = vmatpush.msra.mxu0 %v1873
      %2089 = vmatpush.msra.mxu0 %v1871
      %2090 = vmatpush.msra.mxu0 %v1869
      %2091 = vmatpush.msra.mxu0 %v1867
      %2092 = vmatpush.msra.mxu0 %v1865
      %2093 = vmatmul.f32.gmra.mxu0 %v817
      %v2094 = vpop.f32.mrf.mxu0
      %v2095 = vadd.f32 %v2072, %v2094
      %2096 = vmatmul.f32.gmra.mxu0 %v819
      %v2097 = vpop.f32.mrf.mxu0
      %v2098 = vadd.f32 %v2075, %v2097
      %2099 = vdwg.mxu0
      %2100 = vmatpush.msra.mxu0 %v1864
      %2101 = vmatpush.msra.mxu0 %v1862
      %2102 = vmatpush.msra.mxu0 %v1860
      %2103 = vmatpush.msra.mxu0 %v1858
      %2104 = vmatpush.msra.mxu0 %v1856
      %2105 = vmatpush.msra.mxu0 %v1854
      %2106 = vmatpush.msra.mxu0 %v1852
      %2107 = vmatpush.msra.mxu0 %v1850
      %2108 = vmatpush.msra.mxu0 %v1848
      %2109 = vmatpush.msra.mxu0 %v1846
      %2110 = vmatpush.msra.mxu0 %v1844
      %2111 = vmatpush.msra.mxu0 %v1842
      %2112 = vmatpush.msra.mxu0 %v1840
      %2113 = vmatpush.msra.mxu0 %v1838
      %2114 = vmatpush.msra.mxu0 %v1836
      %2115 = vmatpush.msra.mxu0 %v1834
      %2116 = vmatmul.f32.gmra.mxu0 %v816
      %v2117 = vpop.f32.mrf.mxu0
      %v2118 = vadd.f32 %v2049, %v2117
      %2119 = vmatmul.f32.gmra.mxu0 %v818
      %v2120 = vpop.f32.mrf.mxu0
      %v2121 = vadd.f32 %v2052, %v2120
      %2122 = vdwg.mxu0
      %2123 = vmatpush.msra.mxu0 %v1896
      %2124 = vmatpush.msra.mxu0 %v1894
      %2125 = vmatpush.msra.mxu0 %v1892
      %2126 = vmatpush.msra.mxu0 %v1890
      %2127 = vmatpush.msra.mxu0 %v1888
      %2128 = vmatpush.msra.mxu0 %v1886
      %2129 = vmatpush.msra.mxu0 %v1884
      %2130 = vmatpush.msra.mxu0 %v1882
      %2131 = vmatpush.msra.mxu0 %v1880
      %2132 = vmatpush.msra.mxu0 %v1878
      %2133 = vmatpush.msra.mxu0 %v1876
      %2134 = vmatpush.msra.mxu0 %v1874
      %2135 = vmatpush.msra.mxu0 %v1872
      %2136 = vmatpush.msra.mxu0 %v1870
      %2137 = vmatpush.msra.mxu0 %v1868
      %2138 = vmatpush.msra.mxu0 %v1866
      %2139 = vmatmul.f32.gmra.mxu0 %v817
      %v2140 = vpop.f32.mrf.mxu0
      %v2141 = vadd.f32 %v2118, %v2140
      %2142 = vmatmul.f32.gmra.mxu0 %v819
      %v2143 = vpop.f32.mrf.mxu0
      %v2144 = vadd.f32 %v2121, %v2143
      %2145 = vdwg.mxu0
      %s2146 = scalar_lea.vmem %s4, 1024
      %v2147 = vld [vmem:[%s2146] sm:$0xff]
      %v2148 = vld [vmem:[%s2146 + $0x8] sm:$0xff]
      %v2149 = vld [vmem:[%s2146 + $0x10] sm:$0xff]
      %v2150 = vld [vmem:[%s2146 + $0x18] sm:$0xff]
      %v2151 = vld [vmem:[%s2146 + $0x20] sm:$0xff]
      %v2152 = vld [vmem:[%s2146 + $0x28] sm:$0xff]
      %v2153 = vld [vmem:[%s2146 + $0x30] sm:$0xff]
      %v2154 = vld [vmem:[%s2146 + $0x38] sm:$0xff]
      %v2155 = vld [vmem:[%s2146 + $0x40] sm:$0xff]
      %v2156 = vld [vmem:[%s2146 + $0x48] sm:$0xff]
      %v2157 = vld [vmem:[%s2146 + $0x50] sm:$0xff]
      %v2158 = vld [vmem:[%s2146 + $0x58] sm:$0xff]
      %v2159 = vld [vmem:[%s2146 + $0x60] sm:$0xff]
      %v2160 = vld [vmem:[%s2146 + $0x68] sm:$0xff]
      %v2161 = vld [vmem:[%s2146 + $0x70] sm:$0xff]
      %v2162 = vld [vmem:[%s2146 + $0x78] sm:$0xff]
      %v2163 = vld [vmem:[%s2146 + $0x80] sm:$0xff]
      %v2164 = vld [vmem:[%s2146 + $0x88] sm:$0xff]
      %v2165 = vld [vmem:[%s2146 + $0x90] sm:$0xff]
      %v2166 = vld [vmem:[%s2146 + $0x98] sm:$0xff]
      %v2167 = vld [vmem:[%s2146 + $0xa0] sm:$0xff]
      %v2168 = vld [vmem:[%s2146 + $0xa8] sm:$0xff]
      %v2169 = vld [vmem:[%s2146 + $0xb0] sm:$0xff]
      %v2170 = vld [vmem:[%s2146 + $0xb8] sm:$0xff]
      %v2171 = vld [vmem:[%s2146 + $0xc0] sm:$0xff]
      %v2172 = vld [vmem:[%s2146 + $0xc8] sm:$0xff]
      %v2173 = vld [vmem:[%s2146 + $0xd0] sm:$0xff]
      %v2174 = vld [vmem:[%s2146 + $0xd8] sm:$0xff]
      %v2175 = vld [vmem:[%s2146 + $0xe0] sm:$0xff]
      %v2176 = vld [vmem:[%s2146 + $0xe8] sm:$0xff]
      %v2177 = vld [vmem:[%s2146 + $0xf0] sm:$0xff]
      %v2178 = vld [vmem:[%s2146 + $0xf8] sm:$0xff]
      %v2179 = vld [vmem:[%s2146 + $0x100] sm:$0xff]
      %v2180 = vld [vmem:[%s2146 + $0x108] sm:$0xff]
      %v2181 = vld [vmem:[%s2146 + $0x110] sm:$0xff]
      %v2182 = vld [vmem:[%s2146 + $0x118] sm:$0xff]
      %v2183 = vld [vmem:[%s2146 + $0x120] sm:$0xff]
      %v2184 = vld [vmem:[%s2146 + $0x128] sm:$0xff]
      %v2185 = vld [vmem:[%s2146 + $0x130] sm:$0xff]
      %v2186 = vld [vmem:[%s2146 + $0x138] sm:$0xff]
      %v2187 = vld [vmem:[%s2146 + $0x140] sm:$0xff]
      %v2188 = vld [vmem:[%s2146 + $0x148] sm:$0xff]
      %v2189 = vld [vmem:[%s2146 + $0x150] sm:$0xff]
      %v2190 = vld [vmem:[%s2146 + $0x158] sm:$0xff]
      %v2191 = vld [vmem:[%s2146 + $0x160] sm:$0xff]
      %v2192 = vld [vmem:[%s2146 + $0x168] sm:$0xff]
      %v2193 = vld [vmem:[%s2146 + $0x170] sm:$0xff]
      %v2194 = vld [vmem:[%s2146 + $0x178] sm:$0xff]
      %v2195 = vld [vmem:[%s2146 + $0x180] sm:$0xff]
      %v2196 = vld [vmem:[%s2146 + $0x188] sm:$0xff]
      %v2197 = vld [vmem:[%s2146 + $0x190] sm:$0xff]
      %v2198 = vld [vmem:[%s2146 + $0x198] sm:$0xff]
      %v2199 = vld [vmem:[%s2146 + $0x1a0] sm:$0xff]
      %v2200 = vld [vmem:[%s2146 + $0x1a8] sm:$0xff]
      %v2201 = vld [vmem:[%s2146 + $0x1b0] sm:$0xff]
      %v2202 = vld [vmem:[%s2146 + $0x1b8] sm:$0xff]
      %v2203 = vld [vmem:[%s2146 + $0x1c0] sm:$0xff]
      %v2204 = vld [vmem:[%s2146 + $0x1c8] sm:$0xff]
      %v2205 = vld [vmem:[%s2146 + $0x1d0] sm:$0xff]
      %v2206 = vld [vmem:[%s2146 + $0x1d8] sm:$0xff]
      %v2207 = vld [vmem:[%s2146 + $0x1e0] sm:$0xff]
      %v2208 = vld [vmem:[%s2146 + $0x1e8] sm:$0xff]
      %v2209 = vld [vmem:[%s2146 + $0x1f0] sm:$0xff]
      %v2210 = vld [vmem:[%s2146 + $0x1f8] sm:$0xff]
      %2211 = vmatpush.msra.mxu0 %v2177
      %2212 = vmatpush.msra.mxu0 %v2175
      %2213 = vmatpush.msra.mxu0 %v2173
      %2214 = vmatpush.msra.mxu0 %v2171
      %2215 = vmatpush.msra.mxu0 %v2169
      %2216 = vmatpush.msra.mxu0 %v2167
      %2217 = vmatpush.msra.mxu0 %v2165
      %2218 = vmatpush.msra.mxu0 %v2163
      %2219 = vmatpush.msra.mxu0 %v2161
      %2220 = vmatpush.msra.mxu0 %v2159
      %2221 = vmatpush.msra.mxu0 %v2157
      %2222 = vmatpush.msra.mxu0 %v2155
      %2223 = vmatpush.msra.mxu0 %v2153
      %2224 = vmatpush.msra.mxu0 %v2151
      %2225 = vmatpush.msra.mxu0 %v2149
      %2226 = vmatpush.msra.mxu0 %v2147
      %2227 = vmatmul.f32.gmra.mxu0 %v1829
      %v2228 = vpop.f32.mrf.mxu0
      %v2229 = vadd.f32 0.0, %v2228
      %2230 = vmatmul.f32.gmra.mxu0 %v1831
      %v2231 = vpop.f32.mrf.mxu0
      %v2232 = vadd.f32 0.0, %v2231
      %2233 = vdwg.mxu0
      %2234 = vmatpush.msra.mxu0 %v2209
      %2235 = vmatpush.msra.mxu0 %v2207
      %2236 = vmatpush.msra.mxu0 %v2205
      %2237 = vmatpush.msra.mxu0 %v2203
      %2238 = vmatpush.msra.mxu0 %v2201
      %2239 = vmatpush.msra.mxu0 %v2199
      %2240 = vmatpush.msra.mxu0 %v2197
      %2241 = vmatpush.msra.mxu0 %v2195
      %2242 = vmatpush.msra.mxu0 %v2193
      %2243 = vmatpush.msra.mxu0 %v2191
      %2244 = vmatpush.msra.mxu0 %v2189
      %2245 = vmatpush.msra.mxu0 %v2187
      %2246 = vmatpush.msra.mxu0 %v2185
      %2247 = vmatpush.msra.mxu0 %v2183
      %2248 = vmatpush.msra.mxu0 %v2181
      %2249 = vmatpush.msra.mxu0 %v2179
      %2250 = vmatmul.f32.gmra.mxu0 %v1830
      %v2251 = vpop.f32.mrf.mxu0
      %v2252 = vadd.f32 %v2229, %v2251
      %2253 = vmatmul.f32.gmra.mxu0 %v1832
      %v2254 = vpop.f32.mrf.mxu0
      %v2255 = vadd.f32 %v2232, %v2254
      %2256 = vdwg.mxu0
      %2257 = vmatpush.msra.mxu0 %v2178
      %2258 = vmatpush.msra.mxu0 %v2176
      %2259 = vmatpush.msra.mxu0 %v2174
      %2260 = vmatpush.msra.mxu0 %v2172
      %2261 = vmatpush.msra.mxu0 %v2170
      %2262 = vmatpush.msra.mxu0 %v2168
      %2263 = vmatpush.msra.mxu0 %v2166
      %2264 = vmatpush.msra.mxu0 %v2164
      %2265 = vmatpush.msra.mxu0 %v2162
      %2266 = vmatpush.msra.mxu0 %v2160
      %2267 = vmatpush.msra.mxu0 %v2158
      %2268 = vmatpush.msra.mxu0 %v2156
      %2269 = vmatpush.msra.mxu0 %v2154
      %2270 = vmatpush.msra.mxu0 %v2152
      %2271 = vmatpush.msra.mxu0 %v2150
      %2272 = vmatpush.msra.mxu0 %v2148
      %2273 = vmatmul.f32.gmra.mxu0 %v1829
      %v2274 = vpop.f32.mrf.mxu0
      %v2275 = vadd.f32 0.0, %v2274
      %2276 = vmatmul.f32.gmra.mxu0 %v1831
      %v2277 = vpop.f32.mrf.mxu0
      %v2278 = vadd.f32 0.0, %v2277
      %2279 = vdwg.mxu0
      %2280 = vmatpush.msra.mxu0 %v2210
      %2281 = vmatpush.msra.mxu0 %v2208
      %2282 = vmatpush.msra.mxu0 %v2206
      %2283 = vmatpush.msra.mxu0 %v2204
      %2284 = vmatpush.msra.mxu0 %v2202
      %2285 = vmatpush.msra.mxu0 %v2200
      %2286 = vmatpush.msra.mxu0 %v2198
      %2287 = vmatpush.msra.mxu0 %v2196
      %2288 = vmatpush.msra.mxu0 %v2194
      %2289 = vmatpush.msra.mxu0 %v2192
      %2290 = vmatpush.msra.mxu0 %v2190
      %2291 = vmatpush.msra.mxu0 %v2188
      %2292 = vmatpush.msra.mxu0 %v2186
      %2293 = vmatpush.msra.mxu0 %v2184
      %2294 = vmatpush.msra.mxu0 %v2182
      %2295 = vmatpush.msra.mxu0 %v2180
      %2296 = vmatmul.f32.gmra.mxu0 %v1830
      %v2297 = vpop.f32.mrf.mxu0
      %v2298 = vadd.f32 %v2275, %v2297
      %2299 = vmatmul.f32.gmra.mxu0 %v1832
      %v2300 = vpop.f32.mrf.mxu0
      %v2301 = vadd.f32 %v2278, %v2300
      %2302 = vdwg.mxu0
      %v2303 = vadd.f32 %v2095, %v2252
      %v2304 = vadd.f32 %v2141, %v2298
      %v2305 = vadd.f32 %v2098, %v2255
      %v2306 = vadd.f32 %v2144, %v2301
      %s2307 = scalar_lea.vmem %s5, 17
      %v2308 = vld [vmem:[%s2307] ss:$8 sm:$0x3]
      %s2309 = scalar_lea.vmem %s5, 18
      %v2310 = vld [vmem:[%s2309] ss:$8 sm:$0x3]
      %s2311 = scalar_lea.vmem %s5, 19
      %v2312 = vld [vmem:[%s2311] ss:$8 sm:$0x3]
      %v2314 = vperm.slane %v2308, 0
      %v2315 = vperm.slane %v2308, 1
      %v2318 = vadd.f32 %v2303, %v2314
      %v2319 = vadd.f32 %v2304, %v2315
      %v2320 = vadd.f32 %v2305, %v2314
      %v2321 = vadd.f32 %v2306, %v2315
      %vm2322 = vcmp.ge.f32.partialorder %v2318, 0.0
      %vm2323 = vcmp.ge.f32.partialorder %v2319, 0.0
      %vm2324 = vcmp.ge.f32.partialorder %v2320, 0.0
      %vm2325 = vcmp.ge.f32.partialorder %v2321, 0.0
      %v2326 = vmul.f32 %v2318, 0.01
      %v2327 = vmul.f32 %v2319, 0.01
      %v2328 = vmul.f32 %v2320, 0.01
      %v2329 = vmul.f32 %v2321, 0.01
      %v2330 = vsel %vm2322, %v2318, %v2326
      %v2331 = vsel %vm2323, %v2319, %v2327
      %v2332 = vsel %vm2324, %v2320, %v2328
      %v2333 = vsel %vm2325, %v2321, %v2329
      %v2335 = vperm.slane %v2310, 0
      %v2336 = vperm.slane %v2310, 1
      %v2339 = vmul.f32 %v2330, %v2335
      %v2340 = vmul.f32 %v2331, %v2336
      %v2341 = vmul.f32 %v2332, %v2335
      %v2342 = vmul.f32 %v2333, %v2336
      %v2344 = vperm.slane %v2312, 0
      %v2345 = vperm.slane %v2312, 1
      %v2348 = vadd.f32 %v2339, %v2344
      %v2349 = vadd.f32 %v2340, %v2345
      %v2350 = vadd.f32 %v2341, %v2344
      %v2351 = vadd.f32 %v2342, %v2345
      %2352 = vst [vmem:[%s251] sm:$0xff] %v2348
      %2353 = vst [vmem:[%s251 + $0x8] sm:$0xff] %v2349
      %2354 = vst [vmem:[%s251 + $0x10] sm:$0xff] %v2350
      %2355 = vst [vmem:[%s251 + $0x18] sm:$0xff] %v2351
      %p2356 = scmp.lt.s32.totalorder %s17, 1
      %s2357 = scalar_select %p2356, %s17, 1
      %s2358 = smul.addr %s2357, 4
      %s2359 = smul.addr %s2358, 8
      %s2360 = scalar_lea.vmem %s6, %s2359
      // Predicated region
      $region45: #{upblock_forward.1} parent=43 // pred_check
        %p2361 = pneg %p166
      $region46: #{upblock_forward.1} parent=43 // pred_check_branch
        %2363 = sbr.rel (%p2361) target = $region48
      $region47: #{upblock_forward.1} parent=43 // pred_region
        _
      $region48: #{upblock_forward.1} parent=43 // pred_fallthru
        _
    $region44: #{upblock_forward.1} parent=5 // pred_fallthru
      _
    %p2364 = scmp.le.s32.totalorder 2, %s12
    // Predicated region
    $region49: #{upblock_forward.1} parent=5 // pred_check
      %p2365 = pneg %p2364
    $region50: #{upblock_forward.1} parent=5 // pred_check_branch
      %2367 = sbr.rel (%p2365) target = $region52
    $region51: #{upblock_forward.1} parent=5 // pred_region
      %s2368 = ssub.s32 %s12, 2
      // Predicated region
      $region53: #{upblock_forward.1} parent=51 // pred_check
        %p2369 = pneg %p172
      $region54: #{upblock_forward.1} parent=51 // pred_check_branch
        %2371 = sbr.rel (%p2369) target = $region56
      $region55: #{upblock_forward.1} parent=51 // pred_region
        %p2372 = scmp.lt.s32.totalorder %s18, 1
        %s2373 = scalar_select %p2372, %s18, 1
        %s2374 = smul.addr %s2373, 4
        %s2375 = smul.addr %s2374, 8
        %s2376 = scalar_lea.vmem %s6, %s2375
      $region56: #{upblock_forward.1} parent=51 // pred_fallthru
        _
    $region52: #{upblock_forward.1} parent=5 // pred_fallthru
      _
  $region6: #{upblock_forward.1} parent=0 // loop_footer
    %s16 = sadd.s32 1, %s12
  $region7: #{upblock_forward.1} parent=0 // loop_footer_branch
    %11 = sbr.rel target = $region3
  $region8: #{upblock_forward.1} parent=0 // loop_exit
    _

</llo_original>
